<compile_context>
chip_gen: v7x
topology: tpu7x:2x2x1
jax: 0.10.0
libtpu: 0.0.40
codegen_flags: <defaults>
</compile_context>

<pallas_src>
import functools
import math

import numpy as np
import jax
import jax.numpy as jnp
from jax.experimental import pallas as pl
from jax.experimental.pallas import tpu as pltpu


def _round_up(x, m):
    return ((x + m - 1) // m) * m


def nerf_bases(depth, sine_type):
    if sine_type == "lin_sine":
        return [i + 1 for i in range(depth)]
    if sine_type == "exp_sine":
        return [2 ** i for i in range(depth)]
    raise ValueError(f"unknown sine_type: {sine_type}")


def _nerf_pe_kernel(x_ref, o_ref, arg_ref, *, bases, in_dim):
    """Channel-major block.

    x_ref:   (in_dim, TM)   f32 input block, TM lanes (multiple of 128).
    o_ref:   (2, half, TM)  output block; [0] = sin half, [1] = cos half.
    arg_ref: (half, TM) f32 VMEM scratch holding the lane-dense sin/cos argument.
    """
    x = x_ref[...]
    # Replicate + scale in-kernel (no HBM-side tile): row j*in_dim + c of the argument
    # is bases[j]*pi * x[c, :].  The per-frequency multiply touches small (in_dim, TM)
    # vregs (cheap VPU work into VMEM scratch); the expensive sin/cos below run on the
    # dense (half, TM) array, and both output stores are full, tile-aligned slabs.
    for j, b in enumerate(bases):                     # static unroll; depth is small
        arg_ref[j * in_dim:(j + 1) * in_dim, :] = x * (b * math.pi)
    arg = arg_ref[...]
    o_ref[0, :, :] = jnp.sin(arg).astype(o_ref.dtype)
    o_ref[1, :, :] = jnp.cos(arg).astype(o_ref.dtype)
    # The torch-side `assert not isnan(out).any()` is a host-side check, done by the
    # caller after the pallas_call (see __main__), not inside the kernel.


def _pick_lanes(m, half, requested):
    """Lane-tile size: ~8 grid steps (>=4 per v7x TensorCore), VMEM-budget capped."""
    if requested is not None:
        return max(128, _round_up(requested, 128))
    tm = -(-m // 8)                                   # cdiv(m, 8)
    budget = 12 * 1024 * 1024                         # safe even on v7x (64 MiB VMEM)
    per_lane = half * 4 * 5                           # out 2*half f32 x2 bufs + scratch
    tm = min(tm, max(128, budget // per_lane), 8192)
    return max(128, _round_up(tm, 128))


def nerf_positional_encoding(x, depth=10, sine_type="lin_sine", *,
                             lanes_per_block=None, out_dtype=None,
                             channel_major_output=False):
    """Pallas TPU forward of NerfPositionalEncoding. x: (..., in_dim)."""
    bases = nerf_bases(depth, sine_type)
    *lead, in_dim = x.shape
    half = depth * in_dim
    out_dim = 2 * half
    out_dtype = np.dtype(out_dtype if out_dtype is not None else x.dtype)

    m = 1
    for d in lead:
        m *= d

    # Channel-major compute layout: M on the 128-lane axis.  Only the small (in_dim, m)
    # transposed input is ever copied/padded (never a depth-replicated array).
    x_t = x.reshape(m, in_dim).astype(jnp.float32).T          # (in_dim, m)

    tm = _pick_lanes(m, half, lanes_per_block)
    m_pad = _round_up(m, tm)
    if m_pad != m:
        x_t = jnp.pad(x_t, ((0, 0), (0, m_pad - m)))
    grid = (m_pad // tm,)

    kernel = functools.partial(_nerf_pe_kernel, bases=bases, in_dim=in_dim)

    cost = pl.CostEstimate(
        flops=m_pad * half,                                   # the scale multiplies
        transcendentals=2 * m_pad * half,                     # one sin + one cos each
        bytes_accessed=in_dim * m_pad * 4 + 2 * half * m_pad * out_dtype.itemsize,
    )

    out = pl.pallas_call(
        kernel,
        out_shape=jax.ShapeDtypeStruct((2, half, m_pad), out_dtype),
        grid=grid,
        in_specs=[pl.BlockSpec((in_dim, tm), lambda i: (0, i))],
        out_specs=pl.BlockSpec((2, half, tm), lambda i: (0, 0, i)),
        scratch_shapes=[pltpu.VMEM((half, tm), jnp.float32)],
        compiler_params=pltpu.CompilerParams(
            dimension_semantics=("parallel",),                # dual-TC sharding on v7x
        ),
        cost_estimate=cost,
    )(x_t)

    out_cm = out.reshape(out_dim, m_pad)          # free: contiguous leading-dim merge
    if m_pad != m:
        out_cm = out_cm[:, :m]
    if channel_major_output:
        # Transposed encoding (out_dim, ...): skips the XLA transpose below for
        # consumers (e.g. the following matmul) that can take channel-major input.
        return out_cm.reshape(out_dim, *lead)
    # Torch row-major layout (..., out_dim): one XLA transpose pass over the output.
    return out_cm.T.reshape(*lead, out_dim)


def nerf_positional_encoding_reference(x, depth=10, sine_type="lin_sine"):
    """Plain-JAX reference mirroring the PyTorch forward exactly."""
    bases = nerf_bases(depth, sine_type)
    parts = [jnp.sin(b * math.pi * x) for b in bases]
    parts += [jnp.cos(b * math.pi * x) for b in bases]
    return jnp.concatenate(parts, axis=-1)


if __name__ == "__main__":
    key = jax.random.PRNGKey(0)
    batch, n_queries, in_dim = 2, 1000, 2     # ragged M = 2000 exercises the pad path
    x = jax.random.uniform(key, (batch, n_queries, in_dim), jnp.float32,
                           minval=-1.0, maxval=1.0)

    for depth, sine_type in [(10, "lin_sine"),            # module default
                             (6, "exp_sine")]:
        out = jax.block_until_ready(
            nerf_positional_encoding(x, depth=depth, sine_type=sine_type))
        ref = nerf_positional_encoding_reference(x, depth=depth, sine_type=sine_type)

        assert out.shape == (batch, n_queries, in_dim * depth * 2), out.shape
        assert not bool(jnp.isnan(out).any())              # mirrors the torch assert
        # sin/cos(b*pi*x) is ill-conditioned in its argument: a few f32 ulps of the
        # argument are an irreducible output delta between any two correct
        # implementations, so scale atol with the largest argument magnitude.
        max_arg = max(nerf_bases(depth, sine_type)) * math.pi
        atol = max(1e-5, 4e-6 * max_arg)
        err = float(jnp.max(jnp.abs(out - ref)))
        assert err <= atol, (sine_type, err, atol)

    # bf16 output at the store (compute stays f32): halves output HBM bytes.
    out_bf16 = jax.block_until_ready(
        nerf_positional_encoding(x, depth=10, sine_type="lin_sine",
                                 out_dtype=jnp.bfloat16))
    ref = nerf_positional_encoding_reference(x, depth=10, sine_type="lin_sine")
    assert not bool(jnp.isnan(out_bf16).any())
    assert float(jnp.max(jnp.abs(out_bf16.astype(jnp.float32) - ref))) <= 1e-2

    print("KERNEL_OK")
</pallas_src>

<mosaic_0001>
module attributes {stable_mosaic.version = 11 : i64} {
  func.func @_nerf_pe_kernel(%arg0: i32, %arg1: memref<2x256xf32, #tpu.memory_space<vmem>>, %arg2: memref<2x20x256xf32, #tpu.memory_space<vmem>>, %arg3: memref<20x256xf32, #tpu.memory_space<vmem>>) attributes {dimension_semantics = [#tpu.dimension_semantics<parallel>], iteration_bounds = array<i64: 8>, scalar_prefetch = 0 : i64, scratch_operands = 1 : i64, tpu.core_type = #tpu.core_type<tc>, window_params = [{transform_indices = @transform_0, window_bounds = array<i64: 2, 256>}, {transform_indices = @transform_1, window_bounds = array<i64: 2, 20, 256>}]} {
    %c0 = arith.constant 0 : index
    %c0_0 = arith.constant 0 : index
    %0 = vector.load %arg1[%c0, %c0_0] : memref<2x256xf32, #tpu.memory_space<vmem>>, vector<2x256xf32>
    %cst = arith.constant 3.14159274 : f32
    %1 = vector.broadcast %cst : f32 to vector<2x256xf32>
    %2 = arith.mulf %0, %1 : vector<2x256xf32>
    %c0_1 = arith.constant 0 : index
    %c0_2 = arith.constant 0 : index
    %3 = vector.load %arg3[%c0_1, %c0_2] : memref<20x256xf32, #tpu.memory_space<vmem>>, vector<2x256xf32>
    tpu.vector_store %arg3[%c0_1, %c0_2], %2 {strides = array<i32>} : memref<20x256xf32, #tpu.memory_space<vmem>>, vector<2x256xf32>,
    %cst_3 = arith.constant 6.28318548 : f32
    %4 = vector.broadcast %cst_3 : f32 to vector<2x256xf32>
    %5 = arith.mulf %0, %4 : vector<2x256xf32>
    %c2 = arith.constant 2 : index
    %c0_4 = arith.constant 0 : index
    %6 = vector.load %arg3[%c2, %c0_4] : memref<20x256xf32, #tpu.memory_space<vmem>>, vector<2x256xf32>
    tpu.vector_store %arg3[%c2, %c0_4], %5 {strides = array<i32>} : memref<20x256xf32, #tpu.memory_space<vmem>>, vector<2x256xf32>,
    %cst_5 = arith.constant 9.42477798 : f32
    %7 = vector.broadcast %cst_5 : f32 to vector<2x256xf32>
    %8 = arith.mulf %0, %7 : vector<2x256xf32>
    %c4 = arith.constant 4 : index
    %c0_6 = arith.constant 0 : index
    %9 = vector.load %arg3[%c4, %c0_6] : memref<20x256xf32, #tpu.memory_space<vmem>>, vector<2x256xf32>
    tpu.vector_store %arg3[%c4, %c0_6], %8 {strides = array<i32>} : memref<20x256xf32, #tpu.memory_space<vmem>>, vector<2x256xf32>,
    %cst_7 = arith.constant 12.566371 : f32
    %10 = vector.broadcast %cst_7 : f32 to vector<2x256xf32>
    %11 = arith.mulf %0, %10 : vector<2x256xf32>
    %c6 = arith.constant 6 : index
    %c0_8 = arith.constant 0 : index
    %12 = vector.load %arg3[%c6, %c0_8] : memref<20x256xf32, #tpu.memory_space<vmem>>, vector<2x256xf32>
    tpu.vector_store %arg3[%c6, %c0_8], %11 {strides = array<i32>} : memref<20x256xf32, #tpu.memory_space<vmem>>, vector<2x256xf32>,
    %cst_9 = arith.constant 15.707963 : f32
    %13 = vector.broadcast %cst_9 : f32 to vector<2x256xf32>
    %14 = arith.mulf %0, %13 : vector<2x256xf32>
    %c8 = arith.constant 8 : index
    %c0_10 = arith.constant 0 : index
    %15 = vector.load %arg3[%c8, %c0_10] : memref<20x256xf32, #tpu.memory_space<vmem>>, vector<2x256xf32>
    tpu.vector_store %arg3[%c8, %c0_10], %14 {strides = array<i32>} : memref<20x256xf32, #tpu.memory_space<vmem>>, vector<2x256xf32>,
    %cst_11 = arith.constant 18.849556 : f32
    %16 = vector.broadcast %cst_11 : f32 to vector<2x256xf32>
    %17 = arith.mulf %0, %16 : vector<2x256xf32>
    %c10 = arith.constant 10 : index
    %c0_12 = arith.constant 0 : index
    %18 = vector.load %arg3[%c10, %c0_12] : memref<20x256xf32, #tpu.memory_space<vmem>>, vector<2x256xf32>
    tpu.vector_store %arg3[%c10, %c0_12], %17 {strides = array<i32>} : memref<20x256xf32, #tpu.memory_space<vmem>>, vector<2x256xf32>,
    %cst_13 = arith.constant 21.991148 : f32
    %19 = vector.broadcast %cst_13 : f32 to vector<2x256xf32>
    %20 = arith.mulf %0, %19 : vector<2x256xf32>
    %c12 = arith.constant 12 : index
    %c0_14 = arith.constant 0 : index
    %21 = vector.load %arg3[%c12, %c0_14] : memref<20x256xf32, #tpu.memory_space<vmem>>, vector<2x256xf32>
    tpu.vector_store %arg3[%c12, %c0_14], %20 {strides = array<i32>} : memref<20x256xf32, #tpu.memory_space<vmem>>, vector<2x256xf32>,
    %cst_15 = arith.constant 25.1327419 : f32
    %22 = vector.broadcast %cst_15 : f32 to vector<2x256xf32>
    %23 = arith.mulf %0, %22 : vector<2x256xf32>
    %c14 = arith.constant 14 : index
    %c0_16 = arith.constant 0 : index
    %24 = vector.load %arg3[%c14, %c0_16] : memref<20x256xf32, #tpu.memory_space<vmem>>, vector<2x256xf32>
    tpu.vector_store %arg3[%c14, %c0_16], %23 {strides = array<i32>} : memref<20x256xf32, #tpu.memory_space<vmem>>, vector<2x256xf32>,
    %cst_17 = arith.constant 28.274334 : f32
    %25 = vector.broadcast %cst_17 : f32 to vector<2x256xf32>
    %26 = arith.mulf %0, %25 : vector<2x256xf32>
    %c16 = arith.constant 16 : index
    %c0_18 = arith.constant 0 : index
    %27 = vector.load %arg3[%c16, %c0_18] : memref<20x256xf32, #tpu.memory_space<vmem>>, vector<2x256xf32>
    tpu.vector_store %arg3[%c16, %c0_18], %26 {strides = array<i32>} : memref<20x256xf32, #tpu.memory_space<vmem>>, vector<2x256xf32>,
    %cst_19 = arith.constant 31.415926 : f32
    %28 = vector.broadcast %cst_19 : f32 to vector<2x256xf32>
    %29 = arith.mulf %0, %28 : vector<2x256xf32>
    %c18 = arith.constant 18 : index
    %c0_20 = arith.constant 0 : index
    %30 = vector.load %arg3[%c18, %c0_20] : memref<20x256xf32, #tpu.memory_space<vmem>>, vector<2x256xf32>
    tpu.vector_store %arg3[%c18, %c0_20], %29 {strides = array<i32>} : memref<20x256xf32, #tpu.memory_space<vmem>>, vector<2x256xf32>,
    %c0_21 = arith.constant 0 : index
    %c0_22 = arith.constant 0 : index
    %31 = vector.load %arg3[%c0_21, %c0_22] : memref<20x256xf32, #tpu.memory_space<vmem>>, vector<20x256xf32>
    %32 = math.sin %31 : vector<20x256xf32>
    %c0_23 = arith.constant 0 : index
    %c0_24 = arith.constant 0 : index
    %c0_25 = arith.constant 0 : index
    %33 = vector.load %arg2[%c0_23, %c0_24, %c0_25] : memref<2x20x256xf32, #tpu.memory_space<vmem>>, vector<1x20x256xf32>
    %34 = vector.shape_cast %33 : vector<1x20x256xf32> to vector<20x256xf32>
    %35 = vector.shape_cast %32 : vector<20x256xf32> to vector<1x20x256xf32>
    tpu.vector_store %arg2[%c0_23, %c0_24, %c0_25], %35 {strides = array<i32>} : memref<2x20x256xf32, #tpu.memory_space<vmem>>, vector<1x20x256xf32>,
    %36 = math.cos %31 : vector<20x256xf32>
    %c1 = arith.constant 1 : index
    %c0_26 = arith.constant 0 : index
    %c0_27 = arith.constant 0 : index
    %37 = vector.load %arg2[%c1, %c0_26, %c0_27] : memref<2x20x256xf32, #tpu.memory_space<vmem>>, vector<1x20x256xf32>
    %38 = vector.shape_cast %37 : vector<1x20x256xf32> to vector<20x256xf32>
    %39 = vector.shape_cast %36 : vector<20x256xf32> to vector<1x20x256xf32>
    tpu.vector_store %arg2[%c1, %c0_26, %c0_27], %39 {strides = array<i32>} : memref<2x20x256xf32, #tpu.memory_space<vmem>>, vector<1x20x256xf32>,
    return
  }
  func.func @transform_0(%arg0: i32) -> (i32, i32) {
    %c0_i32 = arith.constant 0 : i32
    %c0_i32_0 = arith.constant 0 : i32
    return %c0_i32, %arg0 : i32, i32
  }
  func.func @transform_1(%arg0: i32) -> (i32, i32, i32) {
    %c0_i32 = arith.constant 0 : i32
    %c0_i32_0 = arith.constant 0 : i32
    %c0_i32_1 = arith.constant 0 : i32
    return %c0_i32, %c0_i32_0, %arg0 : i32, i32, i32
  }
}

</mosaic_0001>

<llo_original>
// kernel: tpu_custom_call.1
$region0: #{tpu_custom_call.1}
  #allocation0 [shape = 'u32[]', space=smem, size = 0x4, offset = 0x4, fixed_abs, tag = 'smem constant byte address 0x4 - core index']
  #allocation1 [shape = 'u32[144,128]{1,0:T(1,128)}', space=vmem, size = 0x12000, scoped, tag = 'internal scratch']
  #allocation2 [shape = 'f32[20,256]{1,0:T(8,128)}', space=vmem, size = 0x6000, scoped, tag = 'scratch operand']
  %s0 = inlined_call_operand.hbm [shape: f32[2,2048], index: 0, kind: input, shape index: {}]
  %s1 = inlined_call_operand.vmem [shape: f32[2,20,2048], index: 1, kind: output, shape index: {}]
  %s2 = sld [smem:[#allocation0]]
  $region60: #{tpu_custom_call.1} parent=0
    _
  %s4 = ssub.s32 1, %s2
  %s5 = scalar_select 0, %s4, %s2
  $region1: #{tpu_custom_call.1} parent=0
    #allocation3 [shape = 'u8[4096]{0}', space=vmem, size = 0x1000, scoped, tag = 'input window, operand 0']
    #allocation4 [shape = 's32[2]{0}', space=sflag, size = 0x8, scoped, tag = 'scoped memory for tpu_custom_call.1']
    #allocation5 [shape = 'u8[98304]{0}', space=vmem, size = 0x18000, scoped, tag = 'output window, operand 0']
    %6 = vsyncpa [#allocation4], 0
    %s7 = scalar_lea.sflag [#allocation4], 1
    %8 = vsyncpa %s7, 0
    loop: start=0, step=1, limit=10
    $region2: #{tpu_custom_call.1} parent=1 // loop_pre_header
      _
    $region3: #{tpu_custom_call.1} parent=1 // loop_header
      %s10 = sphi 0, %s14
      %p11 = scmp.ge.s32.totalorder %s10, 10
      %s20 = sphi 0, %s22
      %s23 = sphi 0, %s20
      %s24 = sphi 0, %s23
      %s40 = sphi 0, %s24
      %s46 = sphi 0, %s48
      %s49 = sphi 0, %s46
      %s50 = sphi 0, %s49
      %s66 = sphi 0, %s50
    $region4: #{tpu_custom_call.1} parent=1 // loop_header_branch
      %13 = sbr.rel (%p11) target = $region8
    $region5: #{tpu_custom_call.1} parent=1 // loop_body
      %s15 = ssub.s32 %s10, 1
      %s16 = ssub.s32 %s10, 2
      %s17 = sadd.s32 %s10, 1
      %s18 = ssub.s32 %s10, %s17
      %p19 = scmp.eq.s32.totalorder %s18, 0
      %s21 = sadd.s32 %s20, 1
      %s22 = scalar_select %p19, %s20, %s21
      %p25 = pneg %p19
      %p26 = scmp.eq.s32.totalorder %s10, 7
      %p27 = por %p25, %p26
      %p28 = scmp.ne.s32.totalorder %s20, %s23
      %p29 = scmp.eq.s32.totalorder %s10, 0
      %p30 = por %p28, %p29
      %p31 = scmp.ne.s32.totalorder %s20, %s23
      %p32 = scmp.eq.s32.totalorder %s15, 7
      %p33 = por %p31, %p32
      %p34 = scmp.ne.s32.totalorder %s23, %s24
      %p35 = scmp.eq.s32.totalorder %s15, 0
      %p36 = por %p34, %p35
      %p37 = scmp.ne.s32.totalorder %s23, %s24
      %p38 = scmp.eq.s32.totalorder %s16, 7
      %p39 = por %p37, %p38
      %p41 = scmp.ne.s32.totalorder %s24, %s40
      %p42 = scmp.eq.s32.totalorder %s16, 0
      %p43 = por %p41, %p42
      %s44 = ssub.s32 %s10, %s17
      %p45 = scmp.eq.s32.totalorder %s44, 0
      %s47 = sadd.s32 %s46, 1
      %s48 = scalar_select %p45, %s46, %s47
      %p51 = pneg %p45
      %p52 = scmp.eq.s32.totalorder %s10, 7
      %p53 = por %p51, %p52
      %p54 = scmp.ne.s32.totalorder %s46, %s49
      %p55 = scmp.eq.s32.totalorder %s10, 0
      %p56 = por %p54, %p55
      %p57 = scmp.ne.s32.totalorder %s46, %s49
      %p58 = scmp.eq.s32.totalorder %s15, 7
      %p59 = por %p57, %p58
      %p60 = scmp.ne.s32.totalorder %s49, %s50
      %p61 = scmp.eq.s32.totalorder %s15, 0
      %p62 = por %p60, %p61
      %p63 = scmp.ne.s32.totalorder %s49, %s50
      %p64 = scmp.eq.s32.totalorder %s16, 7
      %p65 = por %p63, %p64
      %p67 = scmp.ne.s32.totalorder %s50, %s66
      %p68 = scmp.eq.s32.totalorder %s16, 0
      %p69 = por %p67, %p68
      %p70 = scmp.le.s32.totalorder 1, %s10
      %p71 = scmp.lt.s32.totalorder %s10, 9
      %p72 = pnand %p70, %p71
      %p73 = pneg %p72
      // Predicated region
      $region9: #{tpu_custom_call.1} parent=5 // pred_check
        _
      $region10: #{tpu_custom_call.1} parent=5 // pred_check_branch
        %75 = sbr.rel (%p72) target = $region12
      $region11: #{tpu_custom_call.1} parent=5 // pred_region
        %s76 = ssub.s32 %s10, 1
      $region12: #{tpu_custom_call.1} parent=5 // pred_fallthru
        _
      %p77 = scmp.lt.s32.totalorder %s10, 8
      // Predicated region
      $region13: #{tpu_custom_call.1} parent=5 // pred_check
        %p78 = pneg %p77
      $region14: #{tpu_custom_call.1} parent=5 // pred_check_branch
        %80 = sbr.rel (%p78) target = $region16
      $region15: #{tpu_custom_call.1} parent=5 // pred_region
        // Predicated region
        $region17: #{tpu_custom_call.1} parent=15 // pred_check
          %p81 = pneg %p30
        $region18: #{tpu_custom_call.1} parent=15 // pred_check_branch
          %83 = sbr.rel (%p81) target = $region20
        $region19: #{tpu_custom_call.1} parent=15 // pred_region
          %s84 = sand.u32 %s20, 1
          %s85 = scalar_lea.sflag [#allocation4], %s84
          %s86 = sand.u32 %s20, 1
          %s87 = smul.addr %s86, 4
          %s88 = scalar_lea.vmem [#allocation3], %s87
          %s89 = smul.u32 2, %s10
          %s91 = ssub.s32 64, 64
          %92 = vsyncadd %s85, %s91
          %s93 = smul.addr %s89, 32
          %s94 = scalar_lea.hbm %s0, %s93
          %s96 = sshll.u32 %s88, 4
          %s97 = int_to_ptr.vmem [resolvable:$true] %s96
          %99 = dma.hbm_to_vmem [thread:$0]  %s94, 64, %s97, %s85
        $region20: #{tpu_custom_call.1} parent=15 // pred_fallthru
          _
      $region16: #{tpu_custom_call.1} parent=5 // pred_fallthru
        _
      %p100 = scmp.le.s32.totalorder 1, %s10
      %p101 = scmp.lt.s32.totalorder %s10, 9
      %p102 = pnand %p100, %p101
      %p103 = pneg %p102
      // Predicated region
      $region21: #{tpu_custom_call.1} parent=5 // pred_check
        _
      $region22: #{tpu_custom_call.1} parent=5 // pred_check_branch
        %105 = sbr.rel (%p102) target = $region24
      $region23: #{tpu_custom_call.1} parent=5 // pred_region
        %s106 = ssub.s32 %s10, 1
        %s107 = sand.u32 %s23, 1
        %s108 = scalar_lea.sflag [#allocation4], %s107
        %s109 = sand.u32 %s23, 1
        %s110 = smul.addr %s109, 4
        %s111 = scalar_lea.vmem [#allocation3], %s110
        // Predicated region
        $region25: #{tpu_custom_call.1} parent=23 // pred_check
          %p112 = pneg %p36
        $region26: #{tpu_custom_call.1} parent=23 // pred_check_branch
          %114 = sbr.rel (%p112) target = $region28
        $region27: #{tpu_custom_call.1} parent=23 // pred_region
          %115 = dma.done %s108, 64
        $region28: #{tpu_custom_call.1} parent=23 // pred_fallthru
          _
        %s116 = sand.u32 %s23, 1
        %s117 = scalar_lea.sflag [#allocation4], %s116
        %s118 = sand.u32 %s23, 1
        %s119 = smul.addr %s118, 4
        %s120 = scalar_lea.vmem [#allocation3], %s119
        %p121 = pneg %p36
        %p122 = pneg %p33
        %p123 = pneg %p62
        %p124 = pneg %p59
        %s125 = sand.u32 %s49, 1
        %s126 = sand.u32 %s49, 1
        %s127 = smul.addr %s126, 96
        %s128 = scalar_lea.vmem [#allocation5], %s127
        %s129 = smul.u32 2, %s15
        %s130 = smul.u32 2, %s15
        %v131 = vld [vmem:[%s111] sm:$0xf]
        %v132 = vmul.f32 %v131, 3.1415927
        %v135 = vunpack.c.l.s4 1983009808
        %v136 = vunpack.c.0.s8 %v135
        %v137 = vlaneseq
        %v138 = vshrl.u32 %v137, 7
        %v139 = vsub.s32 %v136, %v138
        %v140 = vrot.slane %v132, %v139
        %v141 = vcombine.high %v140, %v140
        %144 = vst [vmem:[#allocation2] sm:$0x3] %v140
        %145 = vst [vmem:[#allocation2 + $0x8] sm:$0x3] %v141
        %v146 = vmul.f32 %v131, 6.2831855
        %v148 = vcombine.low %v146, %v146
        %v150 = vunpack.c.l.s4 1983009808
        %v151 = vunpack.c.0.s8 %v150
        %v152 = vlaneseq
        %v153 = vshrl.u32 %v152, 7
        %v154 = vsub.s32 %v151, %v153
        %v155 = vrot.slane %v148, %v154
        %v156 = vcombine.high %v155, %v155
        %159 = vst [vmem:[#allocation2] sm:$0xc] %v155
        %160 = vst [vmem:[#allocation2 + $0x8] sm:$0xc] %v156
        %v161 = vmul.f32 %v131, 9.424778
        %v164 = vunpack.c.l.s4 1983009808
        %v165 = vunpack.c.0.s8 %v164
        %v166 = vlaneseq
        %v167 = vshrl.u32 %v166, 7
        %v168 = vsub.s32 %v165, %v167
        %v169 = vrot.slane %v161, %v168
        %v170 = vcombine.low %v169, %v169
        %173 = vst [vmem:[#allocation2] sm:$0x30] %v170
        %174 = vst [vmem:[#allocation2 + $0x8] sm:$0x30] %v169
        %v175 = vmul.f32 %v131, 12.566371
        %v177 = vcombine.low %v175, %v175
        %v179 = vunpack.c.l.s4 1983009808
        %v180 = vunpack.c.0.s8 %v179
        %v181 = vlaneseq
        %v182 = vshrl.u32 %v181, 7
        %v183 = vsub.s32 %v180, %v182
        %v184 = vrot.slane %v177, %v183
        %v185 = vcombine.low %v184, %v184
        %188 = vst [vmem:[#allocation2] sm:$0xc0] %v185
        %189 = vst [vmem:[#allocation2 + $0x8] sm:$0xc0] %v184
        %v190 = vmul.f32 %v131, 15.707963
        %v193 = vunpack.c.l.s4 1983009808
        %v194 = vunpack.c.0.s8 %v193
        %v195 = vlaneseq
        %v196 = vshrl.u32 %v195, 7
        %v197 = vsub.s32 %v194, %v196
        %v198 = vrot.slane %v190, %v197
        %v199 = vcombine.high %v198, %v198
        %202 = vst [vmem:[#allocation2 + $0x10] sm:$0x3] %v198
        %203 = vst [vmem:[#allocation2 + $0x18] sm:$0x3] %v199
        %v204 = vmul.f32 %v131, 18.849556
        %v206 = vcombine.low %v204, %v204
        %v208 = vunpack.c.l.s4 1983009808
        %v209 = vunpack.c.0.s8 %v208
        %v210 = vlaneseq
        %v211 = vshrl.u32 %v210, 7
        %v212 = vsub.s32 %v209, %v211
        %v213 = vrot.slane %v206, %v212
        %v214 = vcombine.high %v213, %v213
        %217 = vst [vmem:[#allocation2 + $0x10] sm:$0xc] %v213
        %218 = vst [vmem:[#allocation2 + $0x18] sm:$0xc] %v214
        %v219 = vmul.f32 %v131, 21.991148
        %v222 = vunpack.c.l.s4 1983009808
        %v223 = vunpack.c.0.s8 %v222
        %v224 = vlaneseq
        %v225 = vshrl.u32 %v224, 7
        %v226 = vsub.s32 %v223, %v225
        %v227 = vrot.slane %v219, %v226
        %v228 = vcombine.low %v227, %v227
        %231 = vst [vmem:[#allocation2 + $0x10] sm:$0x30] %v228
        %232 = vst [vmem:[#allocation2 + $0x18] sm:$0x30] %v227
        %v233 = vmul.f32 %v131, 25.132742
        %v235 = vcombine.low %v233, %v233
        %v237 = vunpack.c.l.s4 1983009808
        %v238 = vunpack.c.0.s8 %v237
        %v239 = vlaneseq
        %v240 = vshrl.u32 %v239, 7
        %v241 = vsub.s32 %v238, %v240
        %v242 = vrot.slane %v235, %v241
        %v243 = vcombine.low %v242, %v242
        %246 = vst [vmem:[#allocation2 + $0x10] sm:$0xc0] %v243
        %247 = vst [vmem:[#allocation2 + $0x18] sm:$0xc0] %v242
        %v248 = vmul.f32 %v131, 28.274334
        %v251 = vunpack.c.l.s4 1983009808
        %v252 = vunpack.c.0.s8 %v251
        %v253 = vlaneseq
        %v254 = vshrl.u32 %v253, 7
        %v255 = vsub.s32 %v252, %v254
        %v256 = vrot.slane %v248, %v255
        %v257 = vcombine.high %v256, %v256
        %260 = vst [vmem:[#allocation2 + $0x20] sm:$0x3] %v256
        %261 = vst [vmem:[#allocation2 + $0x28] sm:$0x3] %v257
        %v262 = vmul.f32 %v131, 31.415926
        %v264 = vcombine.low %v262, %v262
        %v266 = vunpack.c.l.s4 1983009808
        %v267 = vunpack.c.0.s8 %v266
        %v268 = vlaneseq
        %v269 = vshrl.u32 %v268, 7
        %v270 = vsub.s32 %v267, %v269
        %v271 = vrot.slane %v264, %v270
        %v272 = vcombine.high %v271, %v271
        %275 = vst [vmem:[#allocation2 + $0x20] sm:$0xc] %v271
        %276 = vst [vmem:[#allocation2 + $0x28] sm:$0xc] %v272
        %v277 = vld [vmem:[#allocation2] sm:$0xff]
        %v278 = vld [vmem:[#allocation2 + $0x8] sm:$0xff]
        %v279 = vld [vmem:[#allocation2 + $0x10] sm:$0xff]
        %v280 = vld [vmem:[#allocation2 + $0x18] sm:$0xff]
        %v281 = vld [vmem:[#allocation2 + $0x20] sm:$0xf]
        %v282 = vld [vmem:[#allocation2 + $0x28] sm:$0xf]
        %v283 = vand.u32 2147483647, %v277
        %vm284 = vcmp.le.f32.partialorder %v283, 0.7853982
        %vm285 = vcmp.lt.s32.totalorder %v277, 0
        %v286 = vand.u32 %v277, 2139095040
        %v287 = vshrl.u32 %v286, 23
        %v288 = vsub.s32 %v287, 127
        %v289 = vand.u32 2147483647, %v277
        %v290 = vand.u32 %v289, 8388607
        %v291 = vor.u32 %v290, 8388608
        %v292 = vsub.s32 0, %v291
        %v293 = vadd.s32 %v288, 1
        %vm294 = vcmp.gt.s32.totalorder %v293, 0
        %v295 = vsel %vm294, %v293, 0
        %v296 = vshrl.u32 %v295, 5
        %v297 = vand.u32 %v295, 31
        %v298 = vsub.s32 32, %v297
        %v299 = vshrl.u32 683565275, %v298
        %v300 = vshll.u32 683565275, %v297
        %v301 = vshrl.u32 2475754826, %v298
        %v302 = vor.u32 %v300, %v301
        %v303 = vshll.u32 2475754826, %v297
        %v304 = vshrl.u32 2131351028, %v298
        %v305 = vor.u32 %v303, %v304
        %v306 = vshll.u32 2131351028, %v297
        %v307 = vshrl.u32 2102212464, %v298
        %v308 = vor.u32 %v306, %v307
        %v309 = vshll.u32 2102212464, %v297
        %v310 = vshrl.u32 920167782, %v298
        %v311 = vor.u32 %v309, %v310
        %v312 = vshll.u32 920167782, %v297
        %v313 = vshrl.u32 1326507024, %v298
        %v314 = vor.u32 %v312, %v313
        %vm315 = vcmp.lt.s32.totalorder %v296, 1
        %vm316 = vcmp.lt.s32.totalorder %v296, 2
        %vm317 = vcmp.lt.s32.totalorder %v296, 3
        %vm318 = vcmp.lt.s32.totalorder %v296, 4
        %v319 = vsel %vm315, %v299, %v302
        %v320 = vsel %vm318, %v308, 2102212464
        %v321 = vsel %vm317, %v305, %v320
        %v322 = vsel %vm316, %v319, %v321
        %v323 = vsel %vm315, %v302, %v305
        %v324 = vsel %vm318, %v311, 920167782
        %v325 = vsel %vm317, %v308, %v324
        %v326 = vsel %vm316, %v323, %v325
        %v327 = vsel %vm315, %v305, %v308
        %v328 = vsel %vm318, %v314, 1326507024
        %v329 = vsel %vm317, %v311, %v328
        %v330 = vsel %vm316, %v327, %v329
        %v331 = vshll.u32 %v291, 8
        %v332 = vmul.u32.u64.compose %v331, %v330
        %v333 = vextract.low.u32 %v332
        %v334 = vextract.high.u32 %v332
        %v335 = vmul.u32.u64.compose %v331, %v326
        %v336 = vextract.low.u32 %v335
        %v337 = vextract.high.u32 %v335
        %v338 = vmul.u32 %v331, %v322
        %v339 = vadd.s32 %v334, %v336
        %vm340 = vc.u32 %v334, %v336
        %v341 = vadd.s32 %v337, 1
        %v342 = vsel %vm340, %v341, %v337
        %v343 = vadd.s32 %v338, %v342
        %v344 = vadd.s32 %v343, 536870912
        %v345 = vshrl.u32 %v344, 30
        %v346 = vshll.u32 %v345, 30
        %v347 = vsub.s32 %v343, %v346
        %vm348 = vcmp.lt.s32.totalorder %v347, 0
        %v349 = vsub.s32 0, %v347
        %v350 = vsel %vm348, %v349, %v347
        %v351 = vclz %v350
        %v352 = vsub.s32 %v351, 2
        %vm353 = vcmp.gt.s32.totalorder 0, %v352
        %v354 = vsel %vm353, 0, %v352
        %v355 = vsub.s32 32, %v354
        %v356 = vshll.u32 %v347, %v354
        %v357 = vshrl.u32 %v339, %v355
        %v358 = vor.u32 %v356, %v357
        %v359 = vsub.s32 4294967266, %v354
        %v360 = vadd.s32 %v359, 127
        %v361 = vshll.u32 %v360, 23
        %v362 = vor.u32 4788187, %v361
        %v363 = vand.u32 2147483647, %v362
        %v365 = vcvt.s32.f32 %v358
        %v366 = vmul.f32 %v365, %v363
        %v367 = vxor.u32 %v366, 2147483648
        %v368 = vsel %vm285, %v367, %v366
        %v369 = vsub.s32 4, %v345
        %v370 = vsel %vm285, %v369, %v345
        %v371 = vsel %vm284, %v277, %v368
        %v372 = vsel %vm284, 0, %v370
        %v373 = vcosq.f32.pop %v371
        %v374 = vsinq.f32.pop %v371
        %vm375 = vweird.f32 %v277
        %v376 = vadd.s32 %v372, 3
        %v377 = vand.u32 %v376, 3
        %vm378 = vcmp.lt.s32.totalorder %v377, 2
        %vm379 = vcmp.eq.s32.totalorder %v377, 0
        %v380 = vxor.u32 %v374, 2147483648
        %v381 = vsel %vm379, %v373, %v380
        %vm382 = vcmp.eq.s32.totalorder %v377, 2
        %v383 = vxor.u32 %v373, 2147483648
        %v384 = vsel %vm382, %v383, %v374
        %v385 = vsel %vm378, %v381, %v384
        %v386 = vsel %vm375, nan, %v385
        %v387 = vand.u32 2147483647, %v278
        %vm388 = vcmp.le.f32.partialorder %v387, 0.7853982
        %vm389 = vcmp.lt.s32.totalorder %v278, 0
        %v390 = vand.u32 %v278, 2139095040
        %v391 = vshrl.u32 %v390, 23
        %v392 = vsub.s32 %v391, 127
        %v393 = vand.u32 2147483647, %v278
        %v394 = vand.u32 %v393, 8388607
        %v395 = vor.u32 %v394, 8388608
        %v396 = vsub.s32 0, %v395
        %v397 = vadd.s32 %v392, 1
        %vm398 = vcmp.gt.s32.totalorder %v397, 0
        %v399 = vsel %vm398, %v397, 0
        %v400 = vshrl.u32 %v399, 5
        %v401 = vand.u32 %v399, 31
        %v402 = vsub.s32 32, %v401
        %v403 = vshrl.u32 683565275, %v402
        %v404 = vshll.u32 683565275, %v401
        %v405 = vshrl.u32 2475754826, %v402
        %v406 = vor.u32 %v404, %v405
        %v407 = vshll.u32 2475754826, %v401
        %v408 = vshrl.u32 2131351028, %v402
        %v409 = vor.u32 %v407, %v408
        %v410 = vshll.u32 2131351028, %v401
        %v411 = vshrl.u32 2102212464, %v402
        %v412 = vor.u32 %v410, %v411
        %v413 = vshll.u32 2102212464, %v401
        %v414 = vshrl.u32 920167782, %v402
        %v415 = vor.u32 %v413, %v414
        %v416 = vshll.u32 920167782, %v401
        %v417 = vshrl.u32 1326507024, %v402
        %v418 = vor.u32 %v416, %v417
        %vm419 = vcmp.lt.s32.totalorder %v400, 1
        %vm420 = vcmp.lt.s32.totalorder %v400, 2
        %vm421 = vcmp.lt.s32.totalorder %v400, 3
        %vm422 = vcmp.lt.s32.totalorder %v400, 4
        %v423 = vsel %vm419, %v403, %v406
        %v424 = vsel %vm422, %v412, 2102212464
        %v425 = vsel %vm421, %v409, %v424
        %v426 = vsel %vm420, %v423, %v425
        %v427 = vsel %vm419, %v406, %v409
        %v428 = vsel %vm422, %v415, 920167782
        %v429 = vsel %vm421, %v412, %v428
        %v430 = vsel %vm420, %v427, %v429
        %v431 = vsel %vm419, %v409, %v412
        %v432 = vsel %vm422, %v418, 1326507024
        %v433 = vsel %vm421, %v415, %v432
        %v434 = vsel %vm420, %v431, %v433
        %v435 = vshll.u32 %v395, 8
        %v436 = vmul.u32.u64.compose %v435, %v434
        %v437 = vextract.low.u32 %v436
        %v438 = vextract.high.u32 %v436
        %v439 = vmul.u32.u64.compose %v435, %v430
        %v440 = vextract.low.u32 %v439
        %v441 = vextract.high.u32 %v439
        %v442 = vmul.u32 %v435, %v426
        %v443 = vadd.s32 %v438, %v440
        %vm444 = vc.u32 %v438, %v440
        %v445 = vadd.s32 %v441, 1
        %v446 = vsel %vm444, %v445, %v441
        %v447 = vadd.s32 %v442, %v446
        %v448 = vadd.s32 %v447, 536870912
        %v449 = vshrl.u32 %v448, 30
        %v450 = vshll.u32 %v449, 30
        %v451 = vsub.s32 %v447, %v450
        %vm452 = vcmp.lt.s32.totalorder %v451, 0
        %v453 = vsub.s32 0, %v451
        %v454 = vsel %vm452, %v453, %v451
        %v455 = vclz %v454
        %v456 = vsub.s32 %v455, 2
        %vm457 = vcmp.gt.s32.totalorder 0, %v456
        %v458 = vsel %vm457, 0, %v456
        %v459 = vsub.s32 32, %v458
        %v460 = vshll.u32 %v451, %v458
        %v461 = vshrl.u32 %v443, %v459
        %v462 = vor.u32 %v460, %v461
        %v463 = vsub.s32 4294967266, %v458
        %v464 = vadd.s32 %v463, 127
        %v465 = vshll.u32 %v464, 23
        %v466 = vor.u32 4788187, %v465
        %v467 = vand.u32 2147483647, %v466
        %v469 = vcvt.s32.f32 %v462
        %v470 = vmul.f32 %v469, %v467
        %v471 = vxor.u32 %v470, 2147483648
        %v472 = vsel %vm389, %v471, %v470
        %v473 = vsub.s32 4, %v449
        %v474 = vsel %vm389, %v473, %v449
        %v475 = vsel %vm388, %v278, %v472
        %v476 = vsel %vm388, 0, %v474
        %v477 = vcosq.f32.pop %v475
        %v478 = vsinq.f32.pop %v475
        %vm479 = vweird.f32 %v278
        %v480 = vadd.s32 %v476, 3
        %v481 = vand.u32 %v480, 3
        %vm482 = vcmp.lt.s32.totalorder %v481, 2
        %vm483 = vcmp.eq.s32.totalorder %v481, 0
        %v484 = vxor.u32 %v478, 2147483648
        %v485 = vsel %vm483, %v477, %v484
        %vm486 = vcmp.eq.s32.totalorder %v481, 2
        %v487 = vxor.u32 %v477, 2147483648
        %v488 = vsel %vm486, %v487, %v478
        %v489 = vsel %vm482, %v485, %v488
        %v490 = vsel %vm479, nan, %v489
        %v491 = vand.u32 2147483647, %v279
        %vm492 = vcmp.le.f32.partialorder %v491, 0.7853982
        %vm493 = vcmp.lt.s32.totalorder %v279, 0
        %v494 = vand.u32 %v279, 2139095040
        %v495 = vshrl.u32 %v494, 23
        %v496 = vsub.s32 %v495, 127
        %v497 = vand.u32 2147483647, %v279
        %v498 = vand.u32 %v497, 8388607
        %v499 = vor.u32 %v498, 8388608
        %v500 = vsub.s32 0, %v499
        %v501 = vadd.s32 %v496, 1
        %vm502 = vcmp.gt.s32.totalorder %v501, 0
        %v503 = vsel %vm502, %v501, 0
        %v504 = vshrl.u32 %v503, 5
        %v505 = vand.u32 %v503, 31
        %v506 = vsub.s32 32, %v505
        %v507 = vshrl.u32 683565275, %v506
        %v508 = vshll.u32 683565275, %v505
        %v509 = vshrl.u32 2475754826, %v506
        %v510 = vor.u32 %v508, %v509
        %v511 = vshll.u32 2475754826, %v505
        %v512 = vshrl.u32 2131351028, %v506
        %v513 = vor.u32 %v511, %v512
        %v514 = vshll.u32 2131351028, %v505
        %v515 = vshrl.u32 2102212464, %v506
        %v516 = vor.u32 %v514, %v515
        %v517 = vshll.u32 2102212464, %v505
        %v518 = vshrl.u32 920167782, %v506
        %v519 = vor.u32 %v517, %v518
        %v520 = vshll.u32 920167782, %v505
        %v521 = vshrl.u32 1326507024, %v506
        %v522 = vor.u32 %v520, %v521
        %vm523 = vcmp.lt.s32.totalorder %v504, 1
        %vm524 = vcmp.lt.s32.totalorder %v504, 2
        %vm525 = vcmp.lt.s32.totalorder %v504, 3
        %vm526 = vcmp.lt.s32.totalorder %v504, 4
        %v527 = vsel %vm523, %v507, %v510
        %v528 = vsel %vm526, %v516, 2102212464
        %v529 = vsel %vm525, %v513, %v528
        %v530 = vsel %vm524, %v527, %v529
        %v531 = vsel %vm523, %v510, %v513
        %v532 = vsel %vm526, %v519, 920167782
        %v533 = vsel %vm525, %v516, %v532
        %v534 = vsel %vm524, %v531, %v533
        %v535 = vsel %vm523, %v513, %v516
        %v536 = vsel %vm526, %v522, 1326507024
        %v537 = vsel %vm525, %v519, %v536
        %v538 = vsel %vm524, %v535, %v537
        %v539 = vshll.u32 %v499, 8
        %v540 = vmul.u32.u64.compose %v539, %v538
        %v541 = vextract.low.u32 %v540
        %v542 = vextract.high.u32 %v540
        %v543 = vmul.u32.u64.compose %v539, %v534
        %v544 = vextract.low.u32 %v543
        %v545 = vextract.high.u32 %v543
        %v546 = vmul.u32 %v539, %v530
        %v547 = vadd.s32 %v542, %v544
        %vm548 = vc.u32 %v542, %v544
        %v549 = vadd.s32 %v545, 1
        %v550 = vsel %vm548, %v549, %v545
        %v551 = vadd.s32 %v546, %v550
        %v552 = vadd.s32 %v551, 536870912
        %v553 = vshrl.u32 %v552, 30
        %v554 = vshll.u32 %v553, 30
        %v555 = vsub.s32 %v551, %v554
        %vm556 = vcmp.lt.s32.totalorder %v555, 0
        %v557 = vsub.s32 0, %v555
        %v558 = vsel %vm556, %v557, %v555
        %v559 = vclz %v558
        %v560 = vsub.s32 %v559, 2
        %vm561 = vcmp.gt.s32.totalorder 0, %v560
        %v562 = vsel %vm561, 0, %v560
        %v563 = vsub.s32 32, %v562
        %v564 = vshll.u32 %v555, %v562
        %v565 = vshrl.u32 %v547, %v563
        %v566 = vor.u32 %v564, %v565
        %v567 = vsub.s32 4294967266, %v562
        %v568 = vadd.s32 %v567, 127
        %v569 = vshll.u32 %v568, 23
        %v570 = vor.u32 4788187, %v569
        %v571 = vand.u32 2147483647, %v570
        %v573 = vcvt.s32.f32 %v566
        %v574 = vmul.f32 %v573, %v571
        %v575 = vxor.u32 %v574, 2147483648
        %v576 = vsel %vm493, %v575, %v574
        %v577 = vsub.s32 4, %v553
        %v578 = vsel %vm493, %v577, %v553
        %v579 = vsel %vm492, %v279, %v576
        %v580 = vsel %vm492, 0, %v578
        %v581 = vcosq.f32.pop %v579
        %v582 = vsinq.f32.pop %v579
        %vm583 = vweird.f32 %v279
        %v584 = vadd.s32 %v580, 3
        %v585 = vand.u32 %v584, 3
        %vm586 = vcmp.lt.s32.totalorder %v585, 2
        %vm587 = vcmp.eq.s32.totalorder %v585, 0
        %v588 = vxor.u32 %v582, 2147483648
        %v589 = vsel %vm587, %v581, %v588
        %vm590 = vcmp.eq.s32.totalorder %v585, 2
        %v591 = vxor.u32 %v581, 2147483648
        %v592 = vsel %vm590, %v591, %v582
        %v593 = vsel %vm586, %v589, %v592
        %v594 = vsel %vm583, nan, %v593
        %v595 = vand.u32 2147483647, %v280
        %vm596 = vcmp.le.f32.partialorder %v595, 0.7853982
        %vm597 = vcmp.lt.s32.totalorder %v280, 0
        %v598 = vand.u32 %v280, 2139095040
        %v599 = vshrl.u32 %v598, 23
        %v600 = vsub.s32 %v599, 127
        %v601 = vand.u32 2147483647, %v280
        %v602 = vand.u32 %v601, 8388607
        %v603 = vor.u32 %v602, 8388608
        %v604 = vsub.s32 0, %v603
        %v605 = vadd.s32 %v600, 1
        %vm606 = vcmp.gt.s32.totalorder %v605, 0
        %v607 = vsel %vm606, %v605, 0
        %v608 = vshrl.u32 %v607, 5
        %v609 = vand.u32 %v607, 31
        %v610 = vsub.s32 32, %v609
        %v611 = vshrl.u32 683565275, %v610
        %v612 = vshll.u32 683565275, %v609
        %v613 = vshrl.u32 2475754826, %v610
        %v614 = vor.u32 %v612, %v613
        %v615 = vshll.u32 2475754826, %v609
        %v616 = vshrl.u32 2131351028, %v610
        %v617 = vor.u32 %v615, %v616
        %v618 = vshll.u32 2131351028, %v609
        %v619 = vshrl.u32 2102212464, %v610
        %v620 = vor.u32 %v618, %v619
        %v621 = vshll.u32 2102212464, %v609
        %v622 = vshrl.u32 920167782, %v610
        %v623 = vor.u32 %v621, %v622
        %v624 = vshll.u32 920167782, %v609
        %v625 = vshrl.u32 1326507024, %v610
        %v626 = vor.u32 %v624, %v625
        %vm627 = vcmp.lt.s32.totalorder %v608, 1
        %vm628 = vcmp.lt.s32.totalorder %v608, 2
        %vm629 = vcmp.lt.s32.totalorder %v608, 3
        %vm630 = vcmp.lt.s32.totalorder %v608, 4
        %v631 = vsel %vm627, %v611, %v614
        %v632 = vsel %vm630, %v620, 2102212464
        %v633 = vsel %vm629, %v617, %v632
        %v634 = vsel %vm628, %v631, %v633
        %v635 = vsel %vm627, %v614, %v617
        %v636 = vsel %vm630, %v623, 920167782
        %v637 = vsel %vm629, %v620, %v636
        %v638 = vsel %vm628, %v635, %v637
        %v639 = vsel %vm627, %v617, %v620
        %v640 = vsel %vm630, %v626, 1326507024
        %v641 = vsel %vm629, %v623, %v640
        %v642 = vsel %vm628, %v639, %v641
        %v643 = vshll.u32 %v603, 8
        %v644 = vmul.u32.u64.compose %v643, %v642
        %v645 = vextract.low.u32 %v644
        %v646 = vextract.high.u32 %v644
        %v647 = vmul.u32.u64.compose %v643, %v638
        %v648 = vextract.low.u32 %v647
        %v649 = vextract.high.u32 %v647
        %v650 = vmul.u32 %v643, %v634
        %v651 = vadd.s32 %v646, %v648
        %vm652 = vc.u32 %v646, %v648
        %v653 = vadd.s32 %v649, 1
        %v654 = vsel %vm652, %v653, %v649
        %v655 = vadd.s32 %v650, %v654
        %v656 = vadd.s32 %v655, 536870912
        %v657 = vshrl.u32 %v656, 30
        %v658 = vshll.u32 %v657, 30
        %v659 = vsub.s32 %v655, %v658
        %vm660 = vcmp.lt.s32.totalorder %v659, 0
        %v661 = vsub.s32 0, %v659
        %v662 = vsel %vm660, %v661, %v659
        %v663 = vclz %v662
        %v664 = vsub.s32 %v663, 2
        %vm665 = vcmp.gt.s32.totalorder 0, %v664
        %v666 = vsel %vm665, 0, %v664
        %v667 = vsub.s32 32, %v666
        %v668 = vshll.u32 %v659, %v666
        %v669 = vshrl.u32 %v651, %v667
        %v670 = vor.u32 %v668, %v669
        %v671 = vsub.s32 4294967266, %v666
        %v672 = vadd.s32 %v671, 127
        %v673 = vshll.u32 %v672, 23
        %v674 = vor.u32 4788187, %v673
        %v675 = vand.u32 2147483647, %v674
        %v677 = vcvt.s32.f32 %v670
        %v678 = vmul.f32 %v677, %v675
        %v679 = vxor.u32 %v678, 2147483648
        %v680 = vsel %vm597, %v679, %v678
        %v681 = vsub.s32 4, %v657
        %v682 = vsel %vm597, %v681, %v657
        %v683 = vsel %vm596, %v280, %v680
        %v684 = vsel %vm596, 0, %v682
        %v685 = vcosq.f32.pop %v683
        %v686 = vsinq.f32.pop %v683
        %vm687 = vweird.f32 %v280
        %v688 = vadd.s32 %v684, 3
        %v689 = vand.u32 %v688, 3
        %vm690 = vcmp.lt.s32.totalorder %v689, 2
        %vm691 = vcmp.eq.s32.totalorder %v689, 0
        %v692 = vxor.u32 %v686, 2147483648
        %v693 = vsel %vm691, %v685, %v692
        %vm694 = vcmp.eq.s32.totalorder %v689, 2
        %v695 = vxor.u32 %v685, 2147483648
        %v696 = vsel %vm694, %v695, %v686
        %v697 = vsel %vm690, %v693, %v696
        %v698 = vsel %vm687, nan, %v697
        %v699 = vand.u32 2147483647, %v281
        %vm700 = vcmp.le.f32.partialorder %v699, 0.7853982
        %vm701 = vcmp.lt.s32.totalorder %v281, 0
        %v702 = vand.u32 %v281, 2139095040
        %v703 = vshrl.u32 %v702, 23
        %v704 = vsub.s32 %v703, 127
        %v705 = vand.u32 2147483647, %v281
        %v706 = vand.u32 %v705, 8388607
        %v707 = vor.u32 %v706, 8388608
        %v708 = vsub.s32 0, %v707
        %v709 = vadd.s32 %v704, 1
        %vm710 = vcmp.gt.s32.totalorder %v709, 0
        %v711 = vsel %vm710, %v709, 0
        %v712 = vshrl.u32 %v711, 5
        %v713 = vand.u32 %v711, 31
        %v714 = vsub.s32 32, %v713
        %v715 = vshrl.u32 683565275, %v714
        %v716 = vshll.u32 683565275, %v713
        %v717 = vshrl.u32 2475754826, %v714
        %v718 = vor.u32 %v716, %v717
        %v719 = vshll.u32 2475754826, %v713
        %v720 = vshrl.u32 2131351028, %v714
        %v721 = vor.u32 %v719, %v720
        %v722 = vshll.u32 2131351028, %v713
        %v723 = vshrl.u32 2102212464, %v714
        %v724 = vor.u32 %v722, %v723
        %v725 = vshll.u32 2102212464, %v713
        %v726 = vshrl.u32 920167782, %v714
        %v727 = vor.u32 %v725, %v726
        %v728 = vshll.u32 920167782, %v713
        %v729 = vshrl.u32 1326507024, %v714
        %v730 = vor.u32 %v728, %v729
        %vm731 = vcmp.lt.s32.totalorder %v712, 1
        %vm732 = vcmp.lt.s32.totalorder %v712, 2
        %vm733 = vcmp.lt.s32.totalorder %v712, 3
        %vm734 = vcmp.lt.s32.totalorder %v712, 4
        %v735 = vsel %vm731, %v715, %v718
        %v736 = vsel %vm734, %v724, 2102212464
        %v737 = vsel %vm733, %v721, %v736
        %v738 = vsel %vm732, %v735, %v737
        %v739 = vsel %vm731, %v718, %v721
        %v740 = vsel %vm734, %v727, 920167782
        %v741 = vsel %vm733, %v724, %v740
        %v742 = vsel %vm732, %v739, %v741
        %v743 = vsel %vm731, %v721, %v724
        %v744 = vsel %vm734, %v730, 1326507024
        %v745 = vsel %vm733, %v727, %v744
        %v746 = vsel %vm732, %v743, %v745
        %v747 = vshll.u32 %v707, 8
        %v748 = vmul.u32.u64.compose %v747, %v746
        %v749 = vextract.low.u32 %v748
        %v750 = vextract.high.u32 %v748
        %v751 = vmul.u32.u64.compose %v747, %v742
        %v752 = vextract.low.u32 %v751
        %v753 = vextract.high.u32 %v751
        %v754 = vmul.u32 %v747, %v738
        %v755 = vadd.s32 %v750, %v752
        %vm756 = vc.u32 %v750, %v752
        %v757 = vadd.s32 %v753, 1
        %v758 = vsel %vm756, %v757, %v753
        %v759 = vadd.s32 %v754, %v758
        %v760 = vadd.s32 %v759, 536870912
        %v761 = vshrl.u32 %v760, 30
        %v762 = vshll.u32 %v761, 30
        %v763 = vsub.s32 %v759, %v762
        %vm764 = vcmp.lt.s32.totalorder %v763, 0
        %v765 = vsub.s32 0, %v763
        %v766 = vsel %vm764, %v765, %v763
        %v767 = vclz %v766
        %v768 = vsub.s32 %v767, 2
        %vm769 = vcmp.gt.s32.totalorder 0, %v768
        %v770 = vsel %vm769, 0, %v768
        %v771 = vsub.s32 32, %v770
        %v772 = vshll.u32 %v763, %v770
        %v773 = vshrl.u32 %v755, %v771
        %v774 = vor.u32 %v772, %v773
        %v775 = vsub.s32 4294967266, %v770
        %v776 = vadd.s32 %v775, 127
        %v777 = vshll.u32 %v776, 23
        %v778 = vor.u32 4788187, %v777
        %v779 = vand.u32 2147483647, %v778
        %v781 = vcvt.s32.f32 %v774
        %v782 = vmul.f32 %v781, %v779
        %v783 = vxor.u32 %v782, 2147483648
        %v784 = vsel %vm701, %v783, %v782
        %v785 = vsub.s32 4, %v761
        %v786 = vsel %vm701, %v785, %v761
        %v787 = vsel %vm700, %v281, %v784
        %v788 = vsel %vm700, 0, %v786
        %v789 = vcosq.f32.pop %v787
        %v790 = vsinq.f32.pop %v787
        %vm791 = vweird.f32 %v281
        %v792 = vadd.s32 %v788, 3
        %v793 = vand.u32 %v792, 3
        %vm794 = vcmp.lt.s32.totalorder %v793, 2
        %vm795 = vcmp.eq.s32.totalorder %v793, 0
        %v796 = vxor.u32 %v790, 2147483648
        %v797 = vsel %vm795, %v789, %v796
        %vm798 = vcmp.eq.s32.totalorder %v793, 2
        %v799 = vxor.u32 %v789, 2147483648
        %v800 = vsel %vm798, %v799, %v790
        %v801 = vsel %vm794, %v797, %v800
        %v802 = vsel %vm791, nan, %v801
        %v803 = vand.u32 2147483647, %v282
        %vm804 = vcmp.le.f32.partialorder %v803, 0.7853982
        %vm805 = vcmp.lt.s32.totalorder %v282, 0
        %v806 = vand.u32 %v282, 2139095040
        %v807 = vshrl.u32 %v806, 23
        %v808 = vsub.s32 %v807, 127
        %v809 = vand.u32 2147483647, %v282
        %v810 = vand.u32 %v809, 8388607
        %v811 = vor.u32 %v810, 8388608
        %v812 = vsub.s32 0, %v811
        %v813 = vadd.s32 %v808, 1
        %vm814 = vcmp.gt.s32.totalorder %v813, 0
        %v815 = vsel %vm814, %v813, 0
        %v816 = vshrl.u32 %v815, 5
        %v817 = vand.u32 %v815, 31
        %v818 = vsub.s32 32, %v817
        %v819 = vshrl.u32 683565275, %v818
        %v820 = vshll.u32 683565275, %v817
        %v821 = vshrl.u32 2475754826, %v818
        %v822 = vor.u32 %v820, %v821
        %v823 = vshll.u32 2475754826, %v817
        %v824 = vshrl.u32 2131351028, %v818
        %v825 = vor.u32 %v823, %v824
        %v826 = vshll.u32 2131351028, %v817
        %v827 = vshrl.u32 2102212464, %v818
        %v828 = vor.u32 %v826, %v827
        %v829 = vshll.u32 2102212464, %v817
        %v830 = vshrl.u32 920167782, %v818
        %v831 = vor.u32 %v829, %v830
        %v832 = vshll.u32 920167782, %v817
        %v833 = vshrl.u32 1326507024, %v818
        %v834 = vor.u32 %v832, %v833
        %vm835 = vcmp.lt.s32.totalorder %v816, 1
        %vm836 = vcmp.lt.s32.totalorder %v816, 2
        %vm837 = vcmp.lt.s32.totalorder %v816, 3
        %vm838 = vcmp.lt.s32.totalorder %v816, 4
        %v839 = vsel %vm835, %v819, %v822
        %v840 = vsel %vm838, %v828, 2102212464
        %v841 = vsel %vm837, %v825, %v840
        %v842 = vsel %vm836, %v839, %v841
        %v843 = vsel %vm835, %v822, %v825
        %v844 = vsel %vm838, %v831, 920167782
        %v845 = vsel %vm837, %v828, %v844
        %v846 = vsel %vm836, %v843, %v845
        %v847 = vsel %vm835, %v825, %v828
        %v848 = vsel %vm838, %v834, 1326507024
        %v849 = vsel %vm837, %v831, %v848
        %v850 = vsel %vm836, %v847, %v849
        %v851 = vshll.u32 %v811, 8
        %v852 = vmul.u32.u64.compose %v851, %v850
        %v853 = vextract.low.u32 %v852
        %v854 = vextract.high.u32 %v852
        %v855 = vmul.u32.u64.compose %v851, %v846
        %v856 = vextract.low.u32 %v855
        %v857 = vextract.high.u32 %v855
        %v858 = vmul.u32 %v851, %v842
        %v859 = vadd.s32 %v854, %v856
        %vm860 = vc.u32 %v854, %v856
        %v861 = vadd.s32 %v857, 1
        %v862 = vsel %vm860, %v861, %v857
        %v863 = vadd.s32 %v858, %v862
        %v864 = vadd.s32 %v863, 536870912
        %v865 = vshrl.u32 %v864, 30
        %v866 = vshll.u32 %v865, 30
        %v867 = vsub.s32 %v863, %v866
        %vm868 = vcmp.lt.s32.totalorder %v867, 0
        %v869 = vsub.s32 0, %v867
        %v870 = vsel %vm868, %v869, %v867
        %v871 = vclz %v870
        %v872 = vsub.s32 %v871, 2
        %vm873 = vcmp.gt.s32.totalorder 0, %v872
        %v874 = vsel %vm873, 0, %v872
        %v875 = vsub.s32 32, %v874
        %v876 = vshll.u32 %v867, %v874
        %v877 = vshrl.u32 %v859, %v875
        %v878 = vor.u32 %v876, %v877
        %v879 = vsub.s32 4294967266, %v874
        %v880 = vadd.s32 %v879, 127
        %v881 = vshll.u32 %v880, 23
        %v882 = vor.u32 4788187, %v881
        %v883 = vand.u32 2147483647, %v882
        %v885 = vcvt.s32.f32 %v878
        %v886 = vmul.f32 %v885, %v883
        %v887 = vxor.u32 %v886, 2147483648
        %v888 = vsel %vm805, %v887, %v886
        %v889 = vsub.s32 4, %v865
        %v890 = vsel %vm805, %v889, %v865
        %v891 = vsel %vm804, %v282, %v888
        %v892 = vsel %vm804, 0, %v890
        %v893 = vcosq.f32.pop %v891
        %v894 = vsinq.f32.pop %v891
        %vm895 = vweird.f32 %v282
        %v896 = vadd.s32 %v892, 3
        %v897 = vand.u32 %v896, 3
        %vm898 = vcmp.lt.s32.totalorder %v897, 2
        %vm899 = vcmp.eq.s32.totalorder %v897, 0
        %v900 = vxor.u32 %v894, 2147483648
        %v901 = vsel %vm899, %v893, %v900
        %vm902 = vcmp.eq.s32.totalorder %v897, 2
        %v903 = vxor.u32 %v893, 2147483648
        %v904 = vsel %vm902, %v903, %v894
        %v905 = vsel %vm898, %v901, %v904
        %v906 = vsel %vm895, nan, %v905
        %907 = vst [vmem:[%s128] sm:$0xff] %v386
        %908 = vst [vmem:[%s128 + $0x8] sm:$0xff] %v490
        %909 = vst [vmem:[%s128 + $0x10] sm:$0xff] %v594
        %910 = vst [vmem:[%s128 + $0x18] sm:$0xff] %v698
        %911 = vst [vmem:[%s128 + $0x20] sm:$0xf] %v802
        %912 = vst [vmem:[%s128 + $0x28] sm:$0xf] %v906
        %v913 = vand.u32 2147483647, %v277
        %vm914 = vcmp.le.f32.partialorder %v913, 0.7853982
        %vm915 = vcmp.lt.s32.totalorder %v277, 0
        %v916 = vand.u32 %v277, 2139095040
        %v917 = vshrl.u32 %v916, 23
        %v918 = vsub.s32 %v917, 127
        %v919 = vand.u32 2147483647, %v277
        %v920 = vand.u32 %v919, 8388607
        %v921 = vor.u32 %v920, 8388608
        %v922 = vsub.s32 0, %v921
        %v923 = vadd.s32 %v918, 1
        %vm924 = vcmp.gt.s32.totalorder %v923, 0
        %v925 = vsel %vm924, %v923, 0
        %v926 = vshrl.u32 %v925, 5
        %v927 = vand.u32 %v925, 31
        %v928 = vsub.s32 32, %v927
        %v929 = vshrl.u32 683565275, %v928
        %v930 = vshll.u32 683565275, %v927
        %v931 = vshrl.u32 2475754826, %v928
        %v932 = vor.u32 %v930, %v931
        %v933 = vshll.u32 2475754826, %v927
        %v934 = vshrl.u32 2131351028, %v928
        %v935 = vor.u32 %v933, %v934
        %v936 = vshll.u32 2131351028, %v927
        %v937 = vshrl.u32 2102212464, %v928
        %v938 = vor.u32 %v936, %v937
        %v939 = vshll.u32 2102212464, %v927
        %v940 = vshrl.u32 920167782, %v928
        %v941 = vor.u32 %v939, %v940
        %v942 = vshll.u32 920167782, %v927
        %v943 = vshrl.u32 1326507024, %v928
        %v944 = vor.u32 %v942, %v943
        %vm945 = vcmp.lt.s32.totalorder %v926, 1
        %vm946 = vcmp.lt.s32.totalorder %v926, 2
        %vm947 = vcmp.lt.s32.totalorder %v926, 3
        %vm948 = vcmp.lt.s32.totalorder %v926, 4
        %v949 = vsel %vm945, %v929, %v932
        %v950 = vsel %vm948, %v938, 2102212464
        %v951 = vsel %vm947, %v935, %v950
        %v952 = vsel %vm946, %v949, %v951
        %v953 = vsel %vm945, %v932, %v935
        %v954 = vsel %vm948, %v941, 920167782
        %v955 = vsel %vm947, %v938, %v954
        %v956 = vsel %vm946, %v953, %v955
        %v957 = vsel %vm945, %v935, %v938
        %v958 = vsel %vm948, %v944, 1326507024
        %v959 = vsel %vm947, %v941, %v958
        %v960 = vsel %vm946, %v957, %v959
        %v961 = vshll.u32 %v921, 8
        %v962 = vmul.u32.u64.compose %v961, %v960
        %v963 = vextract.low.u32 %v962
        %v964 = vextract.high.u32 %v962
        %v965 = vmul.u32.u64.compose %v961, %v956
        %v966 = vextract.low.u32 %v965
        %v967 = vextract.high.u32 %v965
        %v968 = vmul.u32 %v961, %v952
        %v969 = vadd.s32 %v964, %v966
        %vm970 = vc.u32 %v964, %v966
        %v971 = vadd.s32 %v967, 1
        %v972 = vsel %vm970, %v971, %v967
        %v973 = vadd.s32 %v968, %v972
        %v974 = vadd.s32 %v973, 536870912
        %v975 = vshrl.u32 %v974, 30
        %v976 = vshll.u32 %v975, 30
        %v977 = vsub.s32 %v973, %v976
        %vm978 = vcmp.lt.s32.totalorder %v977, 0
        %v979 = vsub.s32 0, %v977
        %v980 = vsel %vm978, %v979, %v977
        %v981 = vclz %v980
        %v982 = vsub.s32 %v981, 2
        %vm983 = vcmp.gt.s32.totalorder 0, %v982
        %v984 = vsel %vm983, 0, %v982
        %v985 = vsub.s32 32, %v984
        %v986 = vshll.u32 %v977, %v984
        %v987 = vshrl.u32 %v969, %v985
        %v988 = vor.u32 %v986, %v987
        %v989 = vsub.s32 4294967266, %v984
        %v990 = vadd.s32 %v989, 127
        %v991 = vshll.u32 %v990, 23
        %v992 = vor.u32 4788187, %v991
        %v993 = vand.u32 2147483647, %v992
        %v995 = vcvt.s32.f32 %v988
        %v996 = vmul.f32 %v995, %v993
        %v997 = vxor.u32 %v996, 2147483648
        %v998 = vsel %vm915, %v997, %v996
        %v999 = vsub.s32 4, %v975
        %v1000 = vsel %vm915, %v999, %v975
        %v1001 = vsel %vm914, %v277, %v998
        %v1002 = vsel %vm914, 0, %v1000
        %v1003 = vcosq.f32.pop %v1001
        %v1004 = vsinq.f32.pop %v1001
        %vm1005 = vweird.f32 %v277
        %v1006 = vand.u32 %v1002, 3
        %vm1007 = vcmp.lt.s32.totalorder %v1006, 2
        %vm1008 = vcmp.eq.s32.totalorder %v1006, 0
        %v1009 = vxor.u32 %v1004, 2147483648
        %v1010 = vsel %vm1008, %v1003, %v1009
        %vm1011 = vcmp.eq.s32.totalorder %v1006, 2
        %v1012 = vxor.u32 %v1003, 2147483648
        %v1013 = vsel %vm1011, %v1012, %v1004
        %v1014 = vsel %vm1007, %v1010, %v1013
        %v1015 = vsel %vm1005, nan, %v1014
        %v1016 = vand.u32 2147483647, %v278
        %vm1017 = vcmp.le.f32.partialorder %v1016, 0.7853982
        %vm1018 = vcmp.lt.s32.totalorder %v278, 0
        %v1019 = vand.u32 %v278, 2139095040
        %v1020 = vshrl.u32 %v1019, 23
        %v1021 = vsub.s32 %v1020, 127
        %v1022 = vand.u32 2147483647, %v278
        %v1023 = vand.u32 %v1022, 8388607
        %v1024 = vor.u32 %v1023, 8388608
        %v1025 = vsub.s32 0, %v1024
        %v1026 = vadd.s32 %v1021, 1
        %vm1027 = vcmp.gt.s32.totalorder %v1026, 0
        %v1028 = vsel %vm1027, %v1026, 0
        %v1029 = vshrl.u32 %v1028, 5
        %v1030 = vand.u32 %v1028, 31
        %v1031 = vsub.s32 32, %v1030
        %v1032 = vshrl.u32 683565275, %v1031
        %v1033 = vshll.u32 683565275, %v1030
        %v1034 = vshrl.u32 2475754826, %v1031
        %v1035 = vor.u32 %v1033, %v1034
        %v1036 = vshll.u32 2475754826, %v1030
        %v1037 = vshrl.u32 2131351028, %v1031
        %v1038 = vor.u32 %v1036, %v1037
        %v1039 = vshll.u32 2131351028, %v1030
        %v1040 = vshrl.u32 2102212464, %v1031
        %v1041 = vor.u32 %v1039, %v1040
        %v1042 = vshll.u32 2102212464, %v1030
        %v1043 = vshrl.u32 920167782, %v1031
        %v1044 = vor.u32 %v1042, %v1043
        %v1045 = vshll.u32 920167782, %v1030
        %v1046 = vshrl.u32 1326507024, %v1031
        %v1047 = vor.u32 %v1045, %v1046
        %vm1048 = vcmp.lt.s32.totalorder %v1029, 1
        %vm1049 = vcmp.lt.s32.totalorder %v1029, 2
        %vm1050 = vcmp.lt.s32.totalorder %v1029, 3
        %vm1051 = vcmp.lt.s32.totalorder %v1029, 4
        %v1052 = vsel %vm1048, %v1032, %v1035
        %v1053 = vsel %vm1051, %v1041, 2102212464
        %v1054 = vsel %vm1050, %v1038, %v1053
        %v1055 = vsel %vm1049, %v1052, %v1054
        %v1056 = vsel %vm1048, %v1035, %v1038
        %v1057 = vsel %vm1051, %v1044, 920167782
        %v1058 = vsel %vm1050, %v1041, %v1057
        %v1059 = vsel %vm1049, %v1056, %v1058
        %v1060 = vsel %vm1048, %v1038, %v1041
        %v1061 = vsel %vm1051, %v1047, 1326507024
        %v1062 = vsel %vm1050, %v1044, %v1061
        %v1063 = vsel %vm1049, %v1060, %v1062
        %v1064 = vshll.u32 %v1024, 8
        %v1065 = vmul.u32.u64.compose %v1064, %v1063
        %v1066 = vextract.low.u32 %v1065
        %v1067 = vextract.high.u32 %v1065
        %v1068 = vmul.u32.u64.compose %v1064, %v1059
        %v1069 = vextract.low.u32 %v1068
        %v1070 = vextract.high.u32 %v1068
        %v1071 = vmul.u32 %v1064, %v1055
        %v1072 = vadd.s32 %v1067, %v1069
        %vm1073 = vc.u32 %v1067, %v1069
        %v1074 = vadd.s32 %v1070, 1
        %v1075 = vsel %vm1073, %v1074, %v1070
        %v1076 = vadd.s32 %v1071, %v1075
        %v1077 = vadd.s32 %v1076, 536870912
        %v1078 = vshrl.u32 %v1077, 30
        %v1079 = vshll.u32 %v1078, 30
        %v1080 = vsub.s32 %v1076, %v1079
        %vm1081 = vcmp.lt.s32.totalorder %v1080, 0
        %v1082 = vsub.s32 0, %v1080
        %v1083 = vsel %vm1081, %v1082, %v1080
        %v1084 = vclz %v1083
        %v1085 = vsub.s32 %v1084, 2
        %vm1086 = vcmp.gt.s32.totalorder 0, %v1085
        %v1087 = vsel %vm1086, 0, %v1085
        %v1088 = vsub.s32 32, %v1087
        %v1089 = vshll.u32 %v1080, %v1087
        %v1090 = vshrl.u32 %v1072, %v1088
        %v1091 = vor.u32 %v1089, %v1090
        %v1092 = vsub.s32 4294967266, %v1087
        %v1093 = vadd.s32 %v1092, 127
        %v1094 = vshll.u32 %v1093, 23
        %v1095 = vor.u32 4788187, %v1094
        %v1096 = vand.u32 2147483647, %v1095
        %v1098 = vcvt.s32.f32 %v1091
        %v1099 = vmul.f32 %v1098, %v1096
        %v1100 = vxor.u32 %v1099, 2147483648
        %v1101 = vsel %vm1018, %v1100, %v1099
        %v1102 = vsub.s32 4, %v1078
        %v1103 = vsel %vm1018, %v1102, %v1078
        %v1104 = vsel %vm1017, %v278, %v1101
        %v1105 = vsel %vm1017, 0, %v1103
        %v1106 = vcosq.f32.pop %v1104
        %v1107 = vsinq.f32.pop %v1104
        %vm1108 = vweird.f32 %v278
        %v1109 = vand.u32 %v1105, 3
        %vm1110 = vcmp.lt.s32.totalorder %v1109, 2
        %vm1111 = vcmp.eq.s32.totalorder %v1109, 0
        %v1112 = vxor.u32 %v1107, 2147483648
        %v1113 = vsel %vm1111, %v1106, %v1112
        %vm1114 = vcmp.eq.s32.totalorder %v1109, 2
        %v1115 = vxor.u32 %v1106, 2147483648
        %v1116 = vsel %vm1114, %v1115, %v1107
        %v1117 = vsel %vm1110, %v1113, %v1116
        %v1118 = vsel %vm1108, nan, %v1117
        %v1119 = vand.u32 2147483647, %v279
        %vm1120 = vcmp.le.f32.partialorder %v1119, 0.7853982
        %vm1121 = vcmp.lt.s32.totalorder %v279, 0
        %v1122 = vand.u32 %v279, 2139095040
        %v1123 = vshrl.u32 %v1122, 23
        %v1124 = vsub.s32 %v1123, 127
        %v1125 = vand.u32 2147483647, %v279
        %v1126 = vand.u32 %v1125, 8388607
        %v1127 = vor.u32 %v1126, 8388608
        %v1128 = vsub.s32 0, %v1127
        %v1129 = vadd.s32 %v1124, 1
        %vm1130 = vcmp.gt.s32.totalorder %v1129, 0
        %v1131 = vsel %vm1130, %v1129, 0
        %v1132 = vshrl.u32 %v1131, 5
        %v1133 = vand.u32 %v1131, 31
        %v1134 = vsub.s32 32, %v1133
        %v1135 = vshrl.u32 683565275, %v1134
        %v1136 = vshll.u32 683565275, %v1133
        %v1137 = vshrl.u32 2475754826, %v1134
        %v1138 = vor.u32 %v1136, %v1137
        %v1139 = vshll.u32 2475754826, %v1133
        %v1140 = vshrl.u32 2131351028, %v1134
        %v1141 = vor.u32 %v1139, %v1140
        %v1142 = vshll.u32 2131351028, %v1133
        %v1143 = vshrl.u32 2102212464, %v1134
        %v1144 = vor.u32 %v1142, %v1143
        %v1145 = vshll.u32 2102212464, %v1133
        %v1146 = vshrl.u32 920167782, %v1134
        %v1147 = vor.u32 %v1145, %v1146
        %v1148 = vshll.u32 920167782, %v1133
        %v1149 = vshrl.u32 1326507024, %v1134
        %v1150 = vor.u32 %v1148, %v1149
        %vm1151 = vcmp.lt.s32.totalorder %v1132, 1
        %vm1152 = vcmp.lt.s32.totalorder %v1132, 2
        %vm1153 = vcmp.lt.s32.totalorder %v1132, 3
        %vm1154 = vcmp.lt.s32.totalorder %v1132, 4
        %v1155 = vsel %vm1151, %v1135, %v1138
        %v1156 = vsel %vm1154, %v1144, 2102212464
        %v1157 = vsel %vm1153, %v1141, %v1156
        %v1158 = vsel %vm1152, %v1155, %v1157
        %v1159 = vsel %vm1151, %v1138, %v1141
        %v1160 = vsel %vm1154, %v1147, 920167782
        %v1161 = vsel %vm1153, %v1144, %v1160
        %v1162 = vsel %vm1152, %v1159, %v1161
        %v1163 = vsel %vm1151, %v1141, %v1144
        %v1164 = vsel %vm1154, %v1150, 1326507024
        %v1165 = vsel %vm1153, %v1147, %v1164
        %v1166 = vsel %vm1152, %v1163, %v1165
        %v1167 = vshll.u32 %v1127, 8
        %v1168 = vmul.u32.u64.compose %v1167, %v1166
        %v1169 = vextract.low.u32 %v1168
        %v1170 = vextract.high.u32 %v1168
        %v1171 = vmul.u32.u64.compose %v1167, %v1162
        %v1172 = vextract.low.u32 %v1171
        %v1173 = vextract.high.u32 %v1171
        %v1174 = vmul.u32 %v1167, %v1158
        %v1175 = vadd.s32 %v1170, %v1172
        %vm1176 = vc.u32 %v1170, %v1172
        %v1177 = vadd.s32 %v1173, 1
        %v1178 = vsel %vm1176, %v1177, %v1173
        %v1179 = vadd.s32 %v1174, %v1178
        %v1180 = vadd.s32 %v1179, 536870912
        %v1181 = vshrl.u32 %v1180, 30
        %v1182 = vshll.u32 %v1181, 30
        %v1183 = vsub.s32 %v1179, %v1182
        %vm1184 = vcmp.lt.s32.totalorder %v1183, 0
        %v1185 = vsub.s32 0, %v1183
        %v1186 = vsel %vm1184, %v1185, %v1183
        %v1187 = vclz %v1186
        %v1188 = vsub.s32 %v1187, 2
        %vm1189 = vcmp.gt.s32.totalorder 0, %v1188
        %v1190 = vsel %vm1189, 0, %v1188
        %v1191 = vsub.s32 32, %v1190
        %v1192 = vshll.u32 %v1183, %v1190
        %v1193 = vshrl.u32 %v1175, %v1191
        %v1194 = vor.u32 %v1192, %v1193
        %v1195 = vsub.s32 4294967266, %v1190
        %v1196 = vadd.s32 %v1195, 127
        %v1197 = vshll.u32 %v1196, 23
        %v1198 = vor.u32 4788187, %v1197
        %v1199 = vand.u32 2147483647, %v1198
        %v1201 = vcvt.s32.f32 %v1194
        %v1202 = vmul.f32 %v1201, %v1199
        %v1203 = vxor.u32 %v1202, 2147483648
        %v1204 = vsel %vm1121, %v1203, %v1202
        %v1205 = vsub.s32 4, %v1181
        %v1206 = vsel %vm1121, %v1205, %v1181
        %v1207 = vsel %vm1120, %v279, %v1204
        %v1208 = vsel %vm1120, 0, %v1206
        %v1209 = vcosq.f32.pop %v1207
        %v1210 = vsinq.f32.pop %v1207
        %vm1211 = vweird.f32 %v279
        %v1212 = vand.u32 %v1208, 3
        %vm1213 = vcmp.lt.s32.totalorder %v1212, 2
        %vm1214 = vcmp.eq.s32.totalorder %v1212, 0
        %v1215 = vxor.u32 %v1210, 2147483648
        %v1216 = vsel %vm1214, %v1209, %v1215
        %vm1217 = vcmp.eq.s32.totalorder %v1212, 2
        %v1218 = vxor.u32 %v1209, 2147483648
        %v1219 = vsel %vm1217, %v1218, %v1210
        %v1220 = vsel %vm1213, %v1216, %v1219
        %v1221 = vsel %vm1211, nan, %v1220
        %v1222 = vand.u32 2147483647, %v280
        %vm1223 = vcmp.le.f32.partialorder %v1222, 0.7853982
        %vm1224 = vcmp.lt.s32.totalorder %v280, 0
        %v1225 = vand.u32 %v280, 2139095040
        %v1226 = vshrl.u32 %v1225, 23
        %v1227 = vsub.s32 %v1226, 127
        %v1228 = vand.u32 2147483647, %v280
        %v1229 = vand.u32 %v1228, 8388607
        %v1230 = vor.u32 %v1229, 8388608
        %v1231 = vsub.s32 0, %v1230
        %v1232 = vadd.s32 %v1227, 1
        %vm1233 = vcmp.gt.s32.totalorder %v1232, 0
        %v1234 = vsel %vm1233, %v1232, 0
        %v1235 = vshrl.u32 %v1234, 5
        %v1236 = vand.u32 %v1234, 31
        %v1237 = vsub.s32 32, %v1236
        %v1238 = vshrl.u32 683565275, %v1237
        %v1239 = vshll.u32 683565275, %v1236
        %v1240 = vshrl.u32 2475754826, %v1237
        %v1241 = vor.u32 %v1239, %v1240
        %v1242 = vshll.u32 2475754826, %v1236
        %v1243 = vshrl.u32 2131351028, %v1237
        %v1244 = vor.u32 %v1242, %v1243
        %v1245 = vshll.u32 2131351028, %v1236
        %v1246 = vshrl.u32 2102212464, %v1237
        %v1247 = vor.u32 %v1245, %v1246
        %v1248 = vshll.u32 2102212464, %v1236
        %v1249 = vshrl.u32 920167782, %v1237
        %v1250 = vor.u32 %v1248, %v1249
        %v1251 = vshll.u32 920167782, %v1236
        %v1252 = vshrl.u32 1326507024, %v1237
        %v1253 = vor.u32 %v1251, %v1252
        %vm1254 = vcmp.lt.s32.totalorder %v1235, 1
        %vm1255 = vcmp.lt.s32.totalorder %v1235, 2
        %vm1256 = vcmp.lt.s32.totalorder %v1235, 3
        %vm1257 = vcmp.lt.s32.totalorder %v1235, 4
        %v1258 = vsel %vm1254, %v1238, %v1241
        %v1259 = vsel %vm1257, %v1247, 2102212464
        %v1260 = vsel %vm1256, %v1244, %v1259
        %v1261 = vsel %vm1255, %v1258, %v1260
        %v1262 = vsel %vm1254, %v1241, %v1244
        %v1263 = vsel %vm1257, %v1250, 920167782
        %v1264 = vsel %vm1256, %v1247, %v1263
        %v1265 = vsel %vm1255, %v1262, %v1264
        %v1266 = vsel %vm1254, %v1244, %v1247
        %v1267 = vsel %vm1257, %v1253, 1326507024
        %v1268 = vsel %vm1256, %v1250, %v1267
        %v1269 = vsel %vm1255, %v1266, %v1268
        %v1270 = vshll.u32 %v1230, 8
        %v1271 = vmul.u32.u64.compose %v1270, %v1269
        %v1272 = vextract.low.u32 %v1271
        %v1273 = vextract.high.u32 %v1271
        %v1274 = vmul.u32.u64.compose %v1270, %v1265
        %v1275 = vextract.low.u32 %v1274
        %v1276 = vextract.high.u32 %v1274
        %v1277 = vmul.u32 %v1270, %v1261
        %v1278 = vadd.s32 %v1273, %v1275
        %vm1279 = vc.u32 %v1273, %v1275
        %v1280 = vadd.s32 %v1276, 1
        %v1281 = vsel %vm1279, %v1280, %v1276
        %v1282 = vadd.s32 %v1277, %v1281
        %v1283 = vadd.s32 %v1282, 536870912
        %v1284 = vshrl.u32 %v1283, 30
        %v1285 = vshll.u32 %v1284, 30
        %v1286 = vsub.s32 %v1282, %v1285
        %vm1287 = vcmp.lt.s32.totalorder %v1286, 0
        %v1288 = vsub.s32 0, %v1286
        %v1289 = vsel %vm1287, %v1288, %v1286
        %v1290 = vclz %v1289
        %v1291 = vsub.s32 %v1290, 2
        %vm1292 = vcmp.gt.s32.totalorder 0, %v1291
        %v1293 = vsel %vm1292, 0, %v1291
        %v1294 = vsub.s32 32, %v1293
        %v1295 = vshll.u32 %v1286, %v1293
        %v1296 = vshrl.u32 %v1278, %v1294
        %v1297 = vor.u32 %v1295, %v1296
        %v1298 = vsub.s32 4294967266, %v1293
        %v1299 = vadd.s32 %v1298, 127
        %v1300 = vshll.u32 %v1299, 23
        %v1301 = vor.u32 4788187, %v1300
        %v1302 = vand.u32 2147483647, %v1301
        %v1304 = vcvt.s32.f32 %v1297
        %v1305 = vmul.f32 %v1304, %v1302
        %v1306 = vxor.u32 %v1305, 2147483648
        %v1307 = vsel %vm1224, %v1306, %v1305
        %v1308 = vsub.s32 4, %v1284
        %v1309 = vsel %vm1224, %v1308, %v1284
        %v1310 = vsel %vm1223, %v280, %v1307
        %v1311 = vsel %vm1223, 0, %v1309
        %v1312 = vcosq.f32.pop %v1310
        %v1313 = vsinq.f32.pop %v1310
        %vm1314 = vweird.f32 %v280
        %v1315 = vand.u32 %v1311, 3
        %vm1316 = vcmp.lt.s32.totalorder %v1315, 2
        %vm1317 = vcmp.eq.s32.totalorder %v1315, 0
        %v1318 = vxor.u32 %v1313, 2147483648
        %v1319 = vsel %vm1317, %v1312, %v1318
        %vm1320 = vcmp.eq.s32.totalorder %v1315, 2
        %v1321 = vxor.u32 %v1312, 2147483648
        %v1322 = vsel %vm1320, %v1321, %v1313
        %v1323 = vsel %vm1316, %v1319, %v1322
        %v1324 = vsel %vm1314, nan, %v1323
        %v1325 = vand.u32 2147483647, %v281
        %vm1326 = vcmp.le.f32.partialorder %v1325, 0.7853982
        %vm1327 = vcmp.lt.s32.totalorder %v281, 0
        %v1328 = vand.u32 %v281, 2139095040
        %v1329 = vshrl.u32 %v1328, 23
        %v1330 = vsub.s32 %v1329, 127
        %v1331 = vand.u32 2147483647, %v281
        %v1332 = vand.u32 %v1331, 8388607
        %v1333 = vor.u32 %v1332, 8388608
        %v1334 = vsub.s32 0, %v1333
        %v1335 = vadd.s32 %v1330, 1
        %vm1336 = vcmp.gt.s32.totalorder %v1335, 0
        %v1337 = vsel %vm1336, %v1335, 0
        %v1338 = vshrl.u32 %v1337, 5
        %v1339 = vand.u32 %v1337, 31
        %v1340 = vsub.s32 32, %v1339
        %v1341 = vshrl.u32 683565275, %v1340
        %v1342 = vshll.u32 683565275, %v1339
        %v1343 = vshrl.u32 2475754826, %v1340
        %v1344 = vor.u32 %v1342, %v1343
        %v1345 = vshll.u32 2475754826, %v1339
        %v1346 = vshrl.u32 2131351028, %v1340
        %v1347 = vor.u32 %v1345, %v1346
        %v1348 = vshll.u32 2131351028, %v1339
        %v1349 = vshrl.u32 2102212464, %v1340
        %v1350 = vor.u32 %v1348, %v1349
        %v1351 = vshll.u32 2102212464, %v1339
        %v1352 = vshrl.u32 920167782, %v1340
        %v1353 = vor.u32 %v1351, %v1352
        %v1354 = vshll.u32 920167782, %v1339
        %v1355 = vshrl.u32 1326507024, %v1340
        %v1356 = vor.u32 %v1354, %v1355
        %vm1357 = vcmp.lt.s32.totalorder %v1338, 1
        %vm1358 = vcmp.lt.s32.totalorder %v1338, 2
        %vm1359 = vcmp.lt.s32.totalorder %v1338, 3
        %vm1360 = vcmp.lt.s32.totalorder %v1338, 4
        %v1361 = vsel %vm1357, %v1341, %v1344
        %v1362 = vsel %vm1360, %v1350, 2102212464
        %v1363 = vsel %vm1359, %v1347, %v1362
        %v1364 = vsel %vm1358, %v1361, %v1363
        %v1365 = vsel %vm1357, %v1344, %v1347
        %v1366 = vsel %vm1360, %v1353, 920167782
        %v1367 = vsel %vm1359, %v1350, %v1366
        %v1368 = vsel %vm1358, %v1365, %v1367
        %v1369 = vsel %vm1357, %v1347, %v1350
        %v1370 = vsel %vm1360, %v1356, 1326507024
        %v1371 = vsel %vm1359, %v1353, %v1370
        %v1372 = vsel %vm1358, %v1369, %v1371
        %v1373 = vshll.u32 %v1333, 8
        %v1374 = vmul.u32.u64.compose %v1373, %v1372
        %v1375 = vextract.low.u32 %v1374
        %v1376 = vextract.high.u32 %v1374
        %v1377 = vmul.u32.u64.compose %v1373, %v1368
        %v1378 = vextract.low.u32 %v1377
        %v1379 = vextract.high.u32 %v1377
        %v1380 = vmul.u32 %v1373, %v1364
        %v1381 = vadd.s32 %v1376, %v1378
        %vm1382 = vc.u32 %v1376, %v1378
        %v1383 = vadd.s32 %v1379, 1
        %v1384 = vsel %vm1382, %v1383, %v1379
        %v1385 = vadd.s32 %v1380, %v1384
        %v1386 = vadd.s32 %v1385, 536870912
        %v1387 = vshrl.u32 %v1386, 30
        %v1388 = vshll.u32 %v1387, 30
        %v1389 = vsub.s32 %v1385, %v1388
        %vm1390 = vcmp.lt.s32.totalorder %v1389, 0
        %v1391 = vsub.s32 0, %v1389
        %v1392 = vsel %vm1390, %v1391, %v1389
        %v1393 = vclz %v1392
        %v1394 = vsub.s32 %v1393, 2
        %vm1395 = vcmp.gt.s32.totalorder 0, %v1394
        %v1396 = vsel %vm1395, 0, %v1394
        %v1397 = vsub.s32 32, %v1396
        %v1398 = vshll.u32 %v1389, %v1396
        %v1399 = vshrl.u32 %v1381, %v1397
        %v1400 = vor.u32 %v1398, %v1399
        %v1401 = vsub.s32 4294967266, %v1396
        %v1402 = vadd.s32 %v1401, 127
        %v1403 = vshll.u32 %v1402, 23
        %v1404 = vor.u32 4788187, %v1403
        %v1405 = vand.u32 2147483647, %v1404
        %v1407 = vcvt.s32.f32 %v1400
        %v1408 = vmul.f32 %v1407, %v1405
        %v1409 = vxor.u32 %v1408, 2147483648
        %v1410 = vsel %vm1327, %v1409, %v1408
        %v1411 = vsub.s32 4, %v1387
        %v1412 = vsel %vm1327, %v1411, %v1387
        %v1413 = vsel %vm1326, %v281, %v1410
        %v1414 = vsel %vm1326, 0, %v1412
        %v1415 = vcosq.f32.pop %v1413
        %v1416 = vsinq.f32.pop %v1413
        %vm1417 = vweird.f32 %v281
        %v1418 = vand.u32 %v1414, 3
        %vm1419 = vcmp.lt.s32.totalorder %v1418, 2
        %vm1420 = vcmp.eq.s32.totalorder %v1418, 0
        %v1421 = vxor.u32 %v1416, 2147483648
        %v1422 = vsel %vm1420, %v1415, %v1421
        %vm1423 = vcmp.eq.s32.totalorder %v1418, 2
        %v1424 = vxor.u32 %v1415, 2147483648
        %v1425 = vsel %vm1423, %v1424, %v1416
        %v1426 = vsel %vm1419, %v1422, %v1425
        %v1427 = vsel %vm1417, nan, %v1426
        %v1428 = vand.u32 2147483647, %v282
        %vm1429 = vcmp.le.f32.partialorder %v1428, 0.7853982
        %vm1430 = vcmp.lt.s32.totalorder %v282, 0
        %v1431 = vand.u32 %v282, 2139095040
        %v1432 = vshrl.u32 %v1431, 23
        %v1433 = vsub.s32 %v1432, 127
        %v1434 = vand.u32 2147483647, %v282
        %v1435 = vand.u32 %v1434, 8388607
        %v1436 = vor.u32 %v1435, 8388608
        %v1437 = vsub.s32 0, %v1436
        %v1438 = vadd.s32 %v1433, 1
        %vm1439 = vcmp.gt.s32.totalorder %v1438, 0
        %v1440 = vsel %vm1439, %v1438, 0
        %v1441 = vshrl.u32 %v1440, 5
        %v1442 = vand.u32 %v1440, 31
        %v1443 = vsub.s32 32, %v1442
        %v1444 = vshrl.u32 683565275, %v1443
        %v1445 = vshll.u32 683565275, %v1442
        %v1446 = vshrl.u32 2475754826, %v1443
        %v1447 = vor.u32 %v1445, %v1446
        %v1448 = vshll.u32 2475754826, %v1442
        %v1449 = vshrl.u32 2131351028, %v1443
        %v1450 = vor.u32 %v1448, %v1449
        %v1451 = vshll.u32 2131351028, %v1442
        %v1452 = vshrl.u32 2102212464, %v1443
        %v1453 = vor.u32 %v1451, %v1452
        %v1454 = vshll.u32 2102212464, %v1442
        %v1455 = vshrl.u32 920167782, %v1443
        %v1456 = vor.u32 %v1454, %v1455
        %v1457 = vshll.u32 920167782, %v1442
        %v1458 = vshrl.u32 1326507024, %v1443
        %v1459 = vor.u32 %v1457, %v1458
        %vm1460 = vcmp.lt.s32.totalorder %v1441, 1
        %vm1461 = vcmp.lt.s32.totalorder %v1441, 2
        %vm1462 = vcmp.lt.s32.totalorder %v1441, 3
        %vm1463 = vcmp.lt.s32.totalorder %v1441, 4
        %v1464 = vsel %vm1460, %v1444, %v1447
        %v1465 = vsel %vm1463, %v1453, 2102212464
        %v1466 = vsel %vm1462, %v1450, %v1465
        %v1467 = vsel %vm1461, %v1464, %v1466
        %v1468 = vsel %vm1460, %v1447, %v1450
        %v1469 = vsel %vm1463, %v1456, 920167782
        %v1470 = vsel %vm1462, %v1453, %v1469
        %v1471 = vsel %vm1461, %v1468, %v1470
        %v1472 = vsel %vm1460, %v1450, %v1453
        %v1473 = vsel %vm1463, %v1459, 1326507024
        %v1474 = vsel %vm1462, %v1456, %v1473
        %v1475 = vsel %vm1461, %v1472, %v1474
        %v1476 = vshll.u32 %v1436, 8
        %v1477 = vmul.u32.u64.compose %v1476, %v1475
        %v1478 = vextract.low.u32 %v1477
        %v1479 = vextract.high.u32 %v1477
        %v1480 = vmul.u32.u64.compose %v1476, %v1471
        %v1481 = vextract.low.u32 %v1480
        %v1482 = vextract.high.u32 %v1480
        %v1483 = vmul.u32 %v1476, %v1467
        %v1484 = vadd.s32 %v1479, %v1481
        %vm1485 = vc.u32 %v1479, %v1481
        %v1486 = vadd.s32 %v1482, 1
        %v1487 = vsel %vm1485, %v1486, %v1482
        %v1488 = vadd.s32 %v1483, %v1487
        %v1489 = vadd.s32 %v1488, 536870912
        %v1490 = vshrl.u32 %v1489, 30
        %v1491 = vshll.u32 %v1490, 30
        %v1492 = vsub.s32 %v1488, %v1491
        %vm1493 = vcmp.lt.s32.totalorder %v1492, 0
        %v1494 = vsub.s32 0, %v1492
        %v1495 = vsel %vm1493, %v1494, %v1492
        %v1496 = vclz %v1495
        %v1497 = vsub.s32 %v1496, 2
        %vm1498 = vcmp.gt.s32.totalorder 0, %v1497
        %v1499 = vsel %vm1498, 0, %v1497
        %v1500 = vsub.s32 32, %v1499
        %v1501 = vshll.u32 %v1492, %v1499
        %v1502 = vshrl.u32 %v1484, %v1500
        %v1503 = vor.u32 %v1501, %v1502
        %v1504 = vsub.s32 4294967266, %v1499
        %v1505 = vadd.s32 %v1504, 127
        %v1506 = vshll.u32 %v1505, 23
        %v1507 = vor.u32 4788187, %v1506
        %v1508 = vand.u32 2147483647, %v1507
        %v1510 = vcvt.s32.f32 %v1503
        %v1511 = vmul.f32 %v1510, %v1508
        %v1512 = vxor.u32 %v1511, 2147483648
        %v1513 = vsel %vm1430, %v1512, %v1511
        %v1514 = vsub.s32 4, %v1490
        %v1515 = vsel %vm1430, %v1514, %v1490
        %v1516 = vsel %vm1429, %v282, %v1513
        %v1517 = vsel %vm1429, 0, %v1515
        %v1518 = vcosq.f32.pop %v1516
        %v1519 = vsinq.f32.pop %v1516
        %vm1520 = vweird.f32 %v282
        %v1521 = vand.u32 %v1517, 3
        %vm1522 = vcmp.lt.s32.totalorder %v1521, 2
        %vm1523 = vcmp.eq.s32.totalorder %v1521, 0
        %v1524 = vxor.u32 %v1519, 2147483648
        %v1525 = vsel %vm1523, %v1518, %v1524
        %vm1526 = vcmp.eq.s32.totalorder %v1521, 2
        %v1527 = vxor.u32 %v1518, 2147483648
        %v1528 = vsel %vm1526, %v1527, %v1519
        %v1529 = vsel %vm1522, %v1525, %v1528
        %v1530 = vsel %vm1520, nan, %v1529
        %s1531 = scalar_lea.vmem %s128, 48 [#allocation5]
        %1532 = vst [vmem:[%s1531] sm:$0xff] %v1015
        %1533 = vst [vmem:[%s1531 + $0x8] sm:$0xff] %v1118
        %1534 = vst [vmem:[%s1531 + $0x10] sm:$0xff] %v1221
        %1535 = vst [vmem:[%s1531 + $0x18] sm:$0xff] %v1324
        %1536 = vst [vmem:[%s1531 + $0x20] sm:$0xf] %v1427
        %1537 = vst [vmem:[%s1531 + $0x28] sm:$0xf] %v1530
        %s1538 = sand.u32 %s49, 1
        %s1539 = sand.u32 %s49, 1
        %s1540 = smul.addr %s1539, 96
        %s1541 = scalar_lea.vmem [#allocation5], %s1540
        // Predicated region
        $region29: #{tpu_custom_call.1} parent=23 // pred_check
          %p1542 = pneg %p59
        $region30: #{tpu_custom_call.1} parent=23 // pred_check_branch
          %1544 = sbr.rel (%p1542) target = $region32
        $region31: #{tpu_custom_call.1} parent=23 // pred_region
          %s1545 = smul.u32 2, %s15
          %s1546 = smul.addr %s1545, 8
          %s1547 = scalar_lea.vmem %s1, %s1546
          // Predicated region
          $region33: #{tpu_custom_call.1} parent=31 // pred_check
            _
          $region34: #{tpu_custom_call.1} parent=31 // pred_check_branch
            %1549 = sbr.rel (0) target = $region36
          $region35: #{tpu_custom_call.1} parent=31 // pred_region
            // Predicated region
            $region37: #{tpu_custom_call.1} parent=35 // pred_check
              _
            $region38: #{tpu_custom_call.1} parent=35 // pred_check_branch
              %1551 = sbr.rel (0) target = $region40
            $region39: #{tpu_custom_call.1} parent=35 // pred_region
              loop: start=0, step=1, limit=1
              $region41: #{tpu_custom_call.1} parent=39 // loop_pre_header
                _
              $region42: #{tpu_custom_call.1} parent=39 // loop_header
                %s1553 = sphi 0, %s1557
                %p1554 = scmp.ge.s32.totalorder %s1553, 1
                %s1558 = sphi %s1541, %s1541
                %s1559 = sphi %s1547, %s1547
              $region43: #{tpu_custom_call.1} parent=39 // loop_header_branch
                %1556 = sbr.rel (%p1554) target = $region47
              $region44: #{tpu_custom_call.1} parent=39 // loop_body
                %v1560 = vld [vmem:[%s1558] sm:$0xff]
                %1561 = vst [vmem:[%s1559] sm:$0xff] %v1560
                %v1562 = vld [vmem:[%s1558 + $0x8] sm:$0xff]
                %1563 = vst [vmem:[%s1559 + $0x8] sm:$0xff] %v1562
                %v1564 = vld [vmem:[%s1558 + $0x10] sm:$0xff]
                %1565 = vst [vmem:[%s1559 + $0x80] sm:$0xff] %v1564
                %v1566 = vld [vmem:[%s1558 + $0x18] sm:$0xff]
                %1567 = vst [vmem:[%s1559 + $0x88] sm:$0xff] %v1566
                %v1568 = vld [vmem:[%s1558 + $0x20] sm:$0xff]
                %1569 = vst [vmem:[%s1559 + $0x100] sm:$0xff] %v1568
                %v1570 = vld [vmem:[%s1558 + $0x28] sm:$0xff]
                %1571 = vst [vmem:[%s1559 + $0x108] sm:$0xff] %v1570
                %v1572 = vld [vmem:[%s1558 + $0x30] sm:$0xff]
                %1573 = vst [vmem:[%s1559 + $0x180] sm:$0xff] %v1572
                %v1574 = vld [vmem:[%s1558 + $0x38] sm:$0xff]
                %1575 = vst [vmem:[%s1559 + $0x188] sm:$0xff] %v1574
                %v1576 = vld [vmem:[%s1558 + $0x40] sm:$0xff]
                %1577 = vst [vmem:[%s1559 + $0x200] sm:$0xff] %v1576
                %v1578 = vld [vmem:[%s1558 + $0x48] sm:$0xff]
                %1579 = vst [vmem:[%s1559 + $0x208] sm:$0xff] %v1578
                %v1580 = vld [vmem:[%s1558 + $0x50] sm:$0xff]
                %1581 = vst [vmem:[%s1559 + $0x280] sm:$0xff] %v1580
                %v1582 = vld [vmem:[%s1558 + $0x58] sm:$0xff]
                %1583 = vst [vmem:[%s1559 + $0x288] sm:$0xff] %v1582
              $region45: #{tpu_custom_call.1} parent=39 // loop_footer
                %s1557 = sadd.s32 1, %s1553
              $region46: #{tpu_custom_call.1} parent=39 // loop_footer_branch
                %1552 = sbr.rel target = $region42
              $region47: #{tpu_custom_call.1} parent=39 // loop_exit
                _
            $region40: #{tpu_custom_call.1} parent=35 // pred_fallthru
              _
            // Predicated region
            $region48: #{tpu_custom_call.1} parent=35 // pred_check
              _
            $region49: #{tpu_custom_call.1} parent=35 // pred_check_branch
              %1585 = sbr.rel target = $region51
            $region50: #{tpu_custom_call.1} parent=35 // pred_region
              _
            $region51: #{tpu_custom_call.1} parent=35 // pred_fallthru
              _
          $region36: #{tpu_custom_call.1} parent=31 // pred_fallthru
            _
          %1586 = vnop
        $region32: #{tpu_custom_call.1} parent=23 // pred_fallthru
          _
      $region24: #{tpu_custom_call.1} parent=5 // pred_fallthru
        _
      %p1587 = scmp.le.s32.totalorder 2, %s10
      // Predicated region
      $region52: #{tpu_custom_call.1} parent=5 // pred_check
        %p1588 = pneg %p1587
      $region53: #{tpu_custom_call.1} parent=5 // pred_check_branch
        %1590 = sbr.rel (%p1588) target = $region55
      $region54: #{tpu_custom_call.1} parent=5 // pred_region
        %s1591 = ssub.s32 %s10, 2
        // Predicated region
        $region56: #{tpu_custom_call.1} parent=54 // pred_check
          %p1592 = pneg %p65
        $region57: #{tpu_custom_call.1} parent=54 // pred_check_branch
          %1594 = sbr.rel (%p1592) target = $region59
        $region58: #{tpu_custom_call.1} parent=54 // pred_region
          %s1595 = sand.u32 %s50, 1
          %s1596 = sand.u32 %s50, 1
          %s1597 = smul.addr %s1596, 96
          %s1598 = scalar_lea.vmem [#allocation5], %s1597
        $region59: #{tpu_custom_call.1} parent=54 // pred_fallthru
          _
      $region55: #{tpu_custom_call.1} parent=5 // pred_fallthru
        _
    $region6: #{tpu_custom_call.1} parent=1 // loop_footer
      %s14 = sadd.s32 1, %s10
    $region7: #{tpu_custom_call.1} parent=1 // loop_footer_branch
      %9 = sbr.rel target = $region3
    $region8: #{tpu_custom_call.1} parent=1 // loop_exit
      _
    %1599 = vsyncpa [#allocation4], 1
    %s1600 = scalar_lea.sflag [#allocation4], 1
    %1601 = vsyncpa %s1600, 1

</llo_original>
